<compile_context>
chip_gen: v7x
topology: tpu7x:2x2x1
jax: 0.10.0
libtpu: 0.0.40
codegen_flags: <defaults>
</compile_context>

<pallas_src>
import jax
import jax.numpy as jnp
from jax.experimental import pallas as pl
from jax.experimental.pallas import tpu as pltpu


def _round_up(v, m):
    return ((v + m - 1) // m) * m


# ----------------------------------------------------------------------------
# Fused kernel: all heads evaluated on one channel-major (Cin, tl) tile.
#   params order: w1_stack, s1_stack, [extra (w, s) pairs], w_out_bd, b_out_stack
# ----------------------------------------------------------------------------
def _make_fused_kernel(extra_info, ch):
    """extra_info: static tuple of (head_idx, num_extra_hidden_layers)."""

    def kernel(x_ref, *refs):
        o_ref = refs[-1]
        p = refs[:-1]

        w1 = p[0][...]                      # (H*Ch, Cin)   compute dtype (bf16/f32)
        s1 = p[1][...]                      # (H*Ch, 1)     f32 (folded bias+BN shift)
        x = x_ref[...]                      # (Cin, tl)     compute dtype

        # One stacked matmul = every head's first hidden conv (BN scale folded in).
        h = jnp.dot(w1, x, preferred_element_type=jnp.float32) + s1
        h = jnp.maximum(h, 0.0)             # elementwise stays f32 (v5e-friendly)

        idx = 2
        # Extra hidden convs (heads with num_conv > 2): small matmul on that
        # head's Ch-aligned row slice, stitched back with aligned concatenation.
        for head_idx, n_extra in extra_info:
            off = head_idx * ch
            hh = h[off:off + ch, :]
            for _ in range(n_extra):
                w = p[idx][...]             # (Ch, Ch), BN scale folded in
                s = p[idx + 1][...]         # (Ch, 1)
                idx += 2
                hh = jnp.dot(w, hh.astype(w.dtype),
                             preferred_element_type=jnp.float32) + s
                hh = jnp.maximum(hh, 0.0)
            pieces = []
            if off > 0:
                pieces.append(h[:off, :])
            pieces.append(hh)
            if off + ch < h.shape[0]:
                pieces.append(h[off + ch:, :])
            h = jnp.concatenate(pieces, axis=0) if len(pieces) > 1 else pieces[0]

        w_out = p[idx][...]                 # (Cout_pad, H*Ch) block-diagonal
        b_out = p[idx + 1][...]             # (Cout_pad, 1)
        out = jnp.dot(w_out, h.astype(w_out.dtype),
                      preferred_element_type=jnp.float32) + b_out

        # Single aligned, lane-dense store of the full (Cout_pad, tl) block.
        o_ref[...] = out.astype(o_ref.dtype)

    return kernel


# ----------------------------------------------------------------------------
# Build-time stacking: stacked first layer, per-head extra layers, block-diag
# final layer (padded to a multiple of 8 output rows).  Done once, not in-kernel.
# ----------------------------------------------------------------------------
def stack_head_params(kernel_params, sep_head_dict, compute_dtype=jnp.bfloat16):
    head_names = list(sep_head_dict)
    c_outs = [sep_head_dict[n]["out_channels"] for n in head_names]
    ch = kernel_params[head_names[0]]["hidden"][0][0].shape[0]   # head_channels
    n_heads = len(head_names)

    # Stacked first hidden layer (BN already folded per head at build time).
    w1 = jnp.concatenate([kernel_params[n]["hidden"][0][0] for n in head_names], axis=0)
    s1 = jnp.concatenate([kernel_params[n]["hidden"][0][1] for n in head_names], axis=0)

    extras, extra_info = [], []
    for hi, n in enumerate(head_names):
        layers = kernel_params[n]["hidden"][1:]
        if layers:
            extra_info.append((hi, len(layers)))
            for (w, s) in layers:
                extras += [w.astype(compute_dtype), s.astype(jnp.float32)]

    # Block-diagonal final layer; pad output rows to a multiple of 8 so the
    # kernel's output block is an integral number of (8,128) tiles.
    c_out_total = sum(c_outs)
    c_out_pad = _round_up(c_out_total, 8)
    wout = jnp.zeros((c_out_pad, n_heads * ch), jnp.float32)
    bout = jnp.zeros((c_out_pad, 1), jnp.float32)
    row = 0
    for hi, n in enumerate(head_names):
        w, bvec = kernel_params[n]["out"]                  # (Cout, Ch), (Cout, 1)
        co = w.shape[0]
        wout = wout.at[row:row + co, hi * ch:(hi + 1) * ch].set(w)
        bout = bout.at[row:row + co, :].set(bvec)
        row += co

    return {
        "w1": w1.astype(compute_dtype),
        "s1": s1.astype(jnp.float32),
        "extras": extras,
        "extra_info": tuple(extra_info),
        "wout": wout.astype(compute_dtype),
        "bout": bout,
        "head_names": tuple(head_names),
        "c_outs": tuple(c_outs),
        "ch": ch,
        "c_out_pad": c_out_pad,
    }


# ----------------------------------------------------------------------------
# Wrapper: one pallas_call for all heads, channel-major lane tiling over (B, L).
# ----------------------------------------------------------------------------
def separate_head_forward(x, stacked, tl=512):
    """x: (B, C_in, L) like the PyTorch Conv1d input. Returns dict of (B, C_out, L)."""
    b, c_in, l = x.shape
    out_dtype = x.dtype
    compute_dtype = stacked["w1"].dtype
    if x.dtype != compute_dtype:
        # In a real pipeline the producer should already emit compute_dtype
        # activations; this cast is the only extra pass over x here.
        x = x.astype(compute_dtype)

    # Lane tile: largest that fits L; keep lane-aligned when tiling.  Ragged
    # last tiles are handled by Pallas's masked partial-block load/store, so no
    # wrapper-side jnp.pad copy of x is needed.
    tl = min(tl, l)
    if tl < l:
        tl = max(128, (tl // 128) * 128)
    n_l = pl.cdiv(l, tl)

    c_out_pad = stacked["c_out_pad"]
    params = [stacked["w1"], stacked["s1"], *stacked["extras"],
              stacked["wout"], stacked["bout"]]
    inputs = [x] + params

    in_specs = [pl.BlockSpec((None, c_in, tl), lambda bi, li: (bi, 0, li))]
    # Weights: full-array blocks, constant index_map -> DMA'd once, reused.
    in_specs += [pl.BlockSpec(p.shape, lambda bi, li: (0, 0)) for p in params]

    mm_params = [params[0]] + stacked["extras"][0::2] + [stacked["wout"]]
    flops_per_pos = 2 * sum(p.shape[0] * p.shape[1] for p in mm_params)
    param_bytes = sum(p.size * p.dtype.itemsize for p in params)
    cost = pl.CostEstimate(
        flops=int(flops_per_pos) * b * l,
        transcendentals=0,
        bytes_accessed=int(x.size * x.dtype.itemsize
                           + b * c_out_pad * l * jnp.dtype(out_dtype).itemsize
                           + param_bytes),
    )

    fused = pl.pallas_call(
        _make_fused_kernel(stacked["extra_info"], stacked["ch"]),
        out_shape=jax.ShapeDtypeStruct((b, c_out_pad, l), out_dtype),
        grid=(b, n_l),
        in_specs=in_specs,
        out_specs=pl.BlockSpec((None, c_out_pad, tl), lambda bi, li: (bi, 0, li)),
        compiler_params=pltpu.CompilerParams(
            dimension_semantics=("parallel", "parallel")),
        cost_estimate=cost,
    )(*inputs)

    ret, row = {}, 0
    for name, co in zip(stacked["head_names"], stacked["c_outs"]):
        ret[name] = fused[:, row:row + co, :]     # cheap slices of the stacked output
        row += co
    return ret


# ----------------------------------------------------------------------------
# Parameter construction (mirrors SeparateHead.__init__, eval-mode BN).
# Returns BN-folded per-head kernel params and the raw (PyTorch-style) params.
# ----------------------------------------------------------------------------
def _kaiming_normal(key, out_ch, in_ch):
    std = (2.0 / in_ch) ** 0.5         # kaiming_normal_: fan_in = in_ch * k = in_ch
    return jax.random.normal(key, (out_ch, in_ch), jnp.float32) * std


def build_params(key, input_channels, head_channels, sep_head_dict,
                 bias_before_bn, bn_eps=1e-5, randomize_bn=True):
    kernel_params, raw_params = {}, {}
    for name, cfg in sep_head_dict.items():
        num_conv = cfg["num_conv"]
        c_out = cfg["out_channels"]
        assert num_conv >= 2, f"{name}: this kernel requires num_conv >= 2"
        if num_conv > 2:
            # PyTorch builds Conv1d(input_channels, head_channels) for every hidden
            # conv, so chains deeper than 2 require input_channels == head_channels.
            assert input_channels == head_channels, (
                f"{name}: num_conv > 2 requires input_channels == head_channels")
        hidden_k, hidden_r = [], []
        for _ in range(num_conv - 1):
            key, k_w, k_b, k_g, k_be, k_m, k_v = jax.random.split(key, 7)
            w = _kaiming_normal(k_w, head_channels, input_channels)        # (Ch, Cin)
            b_conv = (0.1 * jax.random.normal(k_b, (head_channels,), jnp.float32)
                      if bias_before_bn else None)
            if randomize_bn:
                gamma = 1.0 + 0.1 * jax.random.normal(k_g, (head_channels,), jnp.float32)
                beta = 0.1 * jax.random.normal(k_be, (head_channels,), jnp.float32)
                r_mean = 0.1 * jax.random.normal(k_m, (head_channels,), jnp.float32)
                r_var = 1.0 + 0.1 * jax.random.uniform(k_v, (head_channels,), jnp.float32)
            else:
                gamma = jnp.ones((head_channels,), jnp.float32)
                beta = jnp.zeros((head_channels,), jnp.float32)
                r_mean = jnp.zeros((head_channels,), jnp.float32)
                r_var = jnp.ones((head_channels,), jnp.float32)
            s = gamma / jnp.sqrt(r_var + bn_eps)                           # (Ch,)
            b_eff = b_conv if b_conv is not None else jnp.zeros((head_channels,), jnp.float32)
            shift = s * (b_eff - r_mean) + beta                            # (Ch,)
            hidden_k.append((w * s[:, None], shift.reshape(head_channels, 1)))
            hidden_r.append((w, b_conv, gamma, beta, r_mean, r_var))
        key, k_w = jax.random.split(key)
        w_last = _kaiming_normal(k_w, c_out, head_channels)                # (Cout, Ch)
        b_last = (jnp.full((c_out,), -2.19, jnp.float32) if name == "heatmap"
                  else jnp.zeros((c_out,), jnp.float32))
        kernel_params[name] = {"hidden": hidden_k,
                               "out": (w_last, b_last.reshape(c_out, 1))}
        raw_params[name] = {"hidden": hidden_r, "out": (w_last, b_last)}
    return kernel_params, raw_params


# ----------------------------------------------------------------------------
# Pure-JAX reference (literal conv -> eval BN -> ReLU chain from raw params).
# ----------------------------------------------------------------------------
def reference_forward(x, raw_params, sep_head_dict, bn_eps=1e-5):
    ret = {}
    for name in sep_head_dict:
        h = x                                                              # (B, Cin, L)
        for (w, b_conv, gamma, beta, r_mean, r_var) in raw_params[name]["hidden"]:
            h = jnp.einsum("oc,bcl->bol", w, h)
            if b_conv is not None:
                h = h + b_conv[None, :, None]
            h = (h - r_mean[None, :, None]) * (
                gamma[None, :, None] / jnp.sqrt(r_var[None, :, None] + bn_eps))
            h = h + beta[None, :, None]
            h = jnp.maximum(h, 0.0)
        w_out, b_out = raw_params[name]["out"]
        ret[name] = jnp.einsum("oc,bcl->bol", w_out, h) + b_out[None, :, None]
    return ret


if __name__ == "__main__":
    # Small synthetic config (input_channels == head_channels, as in pcdet).
    B, L = 2, 512
    C_IN = HEAD_CHANNELS = 32
    TL = 512   # don't shrink tl for block count; grid (B, 1) still gives 2 blocks
    SEP_HEAD_DICT = {
        "center":  {"out_channels": 2, "num_conv": 2},
        "height":  {"out_channels": 1, "num_conv": 2},
        "dim":     {"out_channels": 3, "num_conv": 3},
        "rot":     {"out_channels": 2, "num_conv": 2},
        "heatmap": {"out_channels": 3, "num_conv": 2},
    }
    BIAS_BEFORE_BN = True

    key = jax.random.PRNGKey(0)
    k_x, k_p = jax.random.split(key)
    x = jax.random.normal(k_x, (B, C_IN, L), jnp.float32)
    kernel_params, raw_params = build_params(
        k_p, C_IN, HEAD_CHANNELS, SEP_HEAD_DICT, BIAS_BEFORE_BN)
    ref = reference_forward(x, raw_params, SEP_HEAD_DICT)

    # 1) Exact-semantics check: f32 MXU operands, tight tolerance.
    stacked_f32 = stack_head_params(kernel_params, SEP_HEAD_DICT,
                                    compute_dtype=jnp.float32)
    out_f32 = separate_head_forward(x, stacked_f32, tl=TL)
    out_f32 = jax.tree_util.tree_map(jax.block_until_ready, out_f32)
    for name, cfg in SEP_HEAD_DICT.items():
        assert out_f32[name].shape == (B, cfg["out_channels"], L), name
        assert jnp.allclose(out_f32[name], ref[name], rtol=1e-5, atol=1e-4), name

    # 2) Fast path: bf16 MXU operands, f32 accumulate/elementwise (loose sanity
    #    check against the f32 reference).
    stacked_bf16 = stack_head_params(kernel_params, SEP_HEAD_DICT,
                                     compute_dtype=jnp.bfloat16)
    out_bf16 = separate_head_forward(x, stacked_bf16, tl=TL)
    out_bf16 = jax.tree_util.tree_map(jax.block_until_ready, out_bf16)
    for name in SEP_HEAD_DICT:
        assert jnp.allclose(out_bf16[name].astype(jnp.float32), ref[name],
                            rtol=5e-2, atol=1e-1), name

    # 3) Ragged-L path: L not a multiple of tl, no wrapper-side jnp.pad copy
    #    (Pallas masks the partial last block on load and store).
    L2 = 448
    x2 = jax.random.normal(jax.random.PRNGKey(1), (B, C_IN, L2), jnp.float32)
    ref2 = reference_forward(x2, raw_params, SEP_HEAD_DICT)
    out2 = separate_head_forward(x2, stacked_f32, tl=256)
    out2 = jax.tree_util.tree_map(jax.block_until_ready, out2)
    for name, cfg in SEP_HEAD_DICT.items():
        assert out2[name].shape == (B, cfg["out_channels"], L2), name
        assert jnp.allclose(out2[name], ref2[name], rtol=1e-5, atol=1e-4), name

    print("KERNEL_OK")
</pallas_src>

<mosaic_0001>
module attributes {stable_mosaic.version = 11 : i64} {
  func.func @kernel(%arg0: i32, %arg1: i32, %arg2: memref<1x32x512xf32, #tpu.memory_space<vmem>>, %arg3: memref<160x32xf32, #tpu.memory_space<vmem>>, %arg4: memref<160x1xf32, #tpu.memory_space<vmem>>, %arg5: memref<32x32xf32, #tpu.memory_space<vmem>>, %arg6: memref<32x1xf32, #tpu.memory_space<vmem>>, %arg7: memref<16x160xf32, #tpu.memory_space<vmem>>, %arg8: memref<16x1xf32, #tpu.memory_space<vmem>>, %arg9: memref<1x16x512xf32, #tpu.memory_space<vmem>>) attributes {dimension_semantics = [#tpu.dimension_semantics<parallel>, #tpu.dimension_semantics<parallel>], iteration_bounds = array<i64: 2, 1>, scalar_prefetch = 0 : i64, scratch_operands = 0 : i64, tpu.core_type = #tpu.core_type<tc>, window_params = [{transform_indices = @transform_0, window_bounds = array<i64: 1, 32, 512>}, {pipeline_mode = #tpu.pipeline_mode<synchronous>, transform_indices = @transform_1, window_bounds = array<i64: 160, 32>}, {pipeline_mode = #tpu.pipeline_mode<synchronous>, transform_indices = @transform_2, window_bounds = array<i64: 160, 1>}, {pipeline_mode = #tpu.pipeline_mode<synchronous>, transform_indices = @transform_3, window_bounds = array<i64: 32, 32>}, {pipeline_mode = #tpu.pipeline_mode<synchronous>, transform_indices = @transform_4, window_bounds = array<i64: 32, 1>}, {pipeline_mode = #tpu.pipeline_mode<synchronous>, transform_indices = @transform_5, window_bounds = array<i64: 16, 160>}, {pipeline_mode = #tpu.pipeline_mode<synchronous>, transform_indices = @transform_6, window_bounds = array<i64: 16, 1>}, {transform_indices = @transform_7, window_bounds = array<i64: 1, 16, 512>}]} {
    %c0 = arith.constant 0 : index
    %c0_0 = arith.constant 0 : index
    %0 = vector.load %arg3[%c0, %c0_0] : memref<160x32xf32, #tpu.memory_space<vmem>>, vector<160x32xf32>
    %c0_1 = arith.constant 0 : index
    %c0_2 = arith.constant 0 : index
    %1 = vector.load %arg4[%c0_1, %c0_2] : memref<160x1xf32, #tpu.memory_space<vmem>>, vector<160x1xf32>
    %c0_3 = arith.constant 0 : index
    %c0_4 = arith.constant 0 : index
    %c0_5 = arith.constant 0 : index
    %2 = vector.load %arg2[%c0_3, %c0_4, %c0_5] : memref<1x32x512xf32, #tpu.memory_space<vmem>>, vector<1x32x512xf32>
    %3 = vector.shape_cast %2 : vector<1x32x512xf32> to vector<32x512xf32>
    %cst = arith.constant dense<0.000000e+00> : vector<160x512xf32>
    %4 = tpu.matmul %0, %3, %cst {dimension_numbers = #tpu.dot_dimension_numbers<[1], [0], [0], [1], [0, 0, 1, 1], [], []>} : vector<160x32xf32>, vector<32x512xf32>, vector<160x512xf32> -> vector<160x512xf32>
    %5 = vector.broadcast %1 : vector<160x1xf32> to vector<160x512xf32>
    %6 = arith.addf %4, %5 : vector<160x512xf32>
    %cst_6 = arith.constant 0.000000e+00 : f32
    %7 = vector.broadcast %cst_6 : f32 to vector<160x512xf32>
    %8 = arith.maximumf %6, %7 : vector<160x512xf32>
    %9 = vector.extract_strided_slice %8 {offsets = [64, 0], sizes = [32, 512], strides = [1, 1]} : vector<160x512xf32> to vector<32x512xf32>
    %c0_7 = arith.constant 0 : index
    %c0_8 = arith.constant 0 : index
    %10 = vector.load %arg5[%c0_7, %c0_8] : memref<32x32xf32, #tpu.memory_space<vmem>>, vector<32x32xf32>
    %c0_9 = arith.constant 0 : index
    %c0_10 = arith.constant 0 : index
    %11 = vector.load %arg6[%c0_9, %c0_10] : memref<32x1xf32, #tpu.memory_space<vmem>>, vector<32x1xf32>
    %cst_11 = arith.constant dense<0.000000e+00> : vector<32x512xf32>
    %12 = tpu.matmul %10, %9, %cst_11 {dimension_numbers = #tpu.dot_dimension_numbers<[1], [0], [0], [1], [0, 0, 1, 1], [], []>} : vector<32x32xf32>, vector<32x512xf32>, vector<32x512xf32> -> vector<32x512xf32>
    %13 = vector.broadcast %11 : vector<32x1xf32> to vector<32x512xf32>
    %14 = arith.addf %12, %13 : vector<32x512xf32>
    %cst_12 = arith.constant 0.000000e+00 : f32
    %15 = vector.broadcast %cst_12 : f32 to vector<32x512xf32>
    %16 = arith.maximumf %14, %15 : vector<32x512xf32>
    %17 = vector.extract_strided_slice %8 {offsets = [0, 0], sizes = [64, 512], strides = [1, 1]} : vector<160x512xf32> to vector<64x512xf32>
    %18 = vector.extract_strided_slice %8 {offsets = [96, 0], sizes = [64, 512], strides = [1, 1]} : vector<160x512xf32> to vector<64x512xf32>
    %19 = tpu.concatenate %17, %16, %18 in 0 : vector<64x512xf32>, vector<32x512xf32>, vector<64x512xf32> -> vector<160x512xf32>
    %c0_13 = arith.constant 0 : index
    %c0_14 = arith.constant 0 : index
    %20 = vector.load %arg7[%c0_13, %c0_14] : memref<16x160xf32, #tpu.memory_space<vmem>>, vector<16x160xf32>
    %c0_15 = arith.constant 0 : index
    %c0_16 = arith.constant 0 : index
    %21 = vector.load %arg8[%c0_15, %c0_16] : memref<16x1xf32, #tpu.memory_space<vmem>>, vector<16x1xf32>
    %cst_17 = arith.constant dense<0.000000e+00> : vector<16x512xf32>
    %22 = tpu.matmul %20, %19, %cst_17 {dimension_numbers = #tpu.dot_dimension_numbers<[1], [0], [0], [1], [0, 0, 1, 1], [], []>} : vector<16x160xf32>, vector<160x512xf32>, vector<16x512xf32> -> vector<16x512xf32>
    %23 = vector.broadcast %21 : vector<16x1xf32> to vector<16x512xf32>
    %24 = arith.addf %22, %23 : vector<16x512xf32>
    %c0_18 = arith.constant 0 : index
    %c0_19 = arith.constant 0 : index
    %c0_20 = arith.constant 0 : index
    %25 = vector.load %arg9[%c0_18, %c0_19, %c0_20] : memref<1x16x512xf32, #tpu.memory_space<vmem>>, vector<1x16x512xf32>
    %26 = vector.shape_cast %25 : vector<1x16x512xf32> to vector<16x512xf32>
    %27 = vector.shape_cast %24 : vector<16x512xf32> to vector<1x16x512xf32>
    tpu.vector_store %arg9[%c0_18, %c0_19, %c0_20], %27 {strides = array<i32>} : memref<1x16x512xf32, #tpu.memory_space<vmem>>, vector<1x16x512xf32>,
    return
  }
  func.func @transform_0(%arg0: i32, %arg1: i32) -> (i32, i32, i32) {
    %c0_i32 = arith.constant 0 : i32
    %c0_i32_0 = arith.constant 0 : i32
    return %arg0, %c0_i32, %arg1 : i32, i32, i32
  }
  func.func @transform_1(%arg0: i32, %arg1: i32) -> (i32, i32) {
    %c0_i32 = arith.constant 0 : i32
    %c0_i32_0 = arith.constant 0 : i32
    %c0_i32_1 = arith.constant 0 : i32
    return %c0_i32, %c0_i32_0 : i32, i32
  }
  func.func @transform_2(%arg0: i32, %arg1: i32) -> (i32, i32) {
    %c0_i32 = arith.constant 0 : i32
    %c0_i32_0 = arith.constant 0 : i32
    %c0_i32_1 = arith.constant 0 : i32
    return %c0_i32, %c0_i32_0 : i32, i32
  }
  func.func @transform_3(%arg0: i32, %arg1: i32) -> (i32, i32) {
    %c0_i32 = arith.constant 0 : i32
    %c0_i32_0 = arith.constant 0 : i32
    %c0_i32_1 = arith.constant 0 : i32
    return %c0_i32, %c0_i32_0 : i32, i32
  }
  func.func @transform_4(%arg0: i32, %arg1: i32) -> (i32, i32) {
    %c0_i32 = arith.constant 0 : i32
    %c0_i32_0 = arith.constant 0 : i32
    %c0_i32_1 = arith.constant 0 : i32
    return %c0_i32, %c0_i32_0 : i32, i32
  }
  func.func @transform_5(%arg0: i32, %arg1: i32) -> (i32, i32) {
    %c0_i32 = arith.constant 0 : i32
    %c0_i32_0 = arith.constant 0 : i32
    %c0_i32_1 = arith.constant 0 : i32
    return %c0_i32, %c0_i32_0 : i32, i32
  }
  func.func @transform_6(%arg0: i32, %arg1: i32) -> (i32, i32) {
    %c0_i32 = arith.constant 0 : i32
    %c0_i32_0 = arith.constant 0 : i32
    %c0_i32_1 = arith.constant 0 : i32
    return %c0_i32, %c0_i32_0 : i32, i32
  }
  func.func @transform_7(%arg0: i32, %arg1: i32) -> (i32, i32, i32) {
    %c0_i32 = arith.constant 0 : i32
    %c0_i32_0 = arith.constant 0 : i32
    return %arg0, %c0_i32, %arg1 : i32, i32, i32
  }
}

</mosaic_0001>

<llo_original>
// kernel: tpu_custom_call.1
$region0: #{tpu_custom_call.1}
  #allocation0 [shape = 'u32[]', space=smem, size = 0x4, offset = 0x4, fixed_abs, tag = 'smem constant byte address 0x4 - core index']
  #allocation1 [shape = 'u32[144,128]{1,0:T(1,128)}', space=vmem, size = 0x12000, scoped, tag = 'internal scratch']
  %s0 = inlined_call_operand.vmem [shape: f32[2,32,512], index: 0, kind: input, shape index: {}]
  %s1 = inlined_call_operand.vmem [shape: f32[160,32], index: 1, kind: input, shape index: {}]
  %s2 = inlined_call_operand.vmem [shape: f32[160,1], index: 2, kind: input, shape index: {}]
  %s3 = inlined_call_operand.vmem [shape: f32[32,32], index: 3, kind: input, shape index: {}]
  %s4 = inlined_call_operand.vmem [shape: f32[32,1], index: 4, kind: input, shape index: {}]
  %s5 = inlined_call_operand.vmem [shape: f32[16,160], index: 5, kind: input, shape index: {}]
  %s6 = inlined_call_operand.vmem [shape: f32[16,1], index: 6, kind: input, shape index: {}]
  %s7 = inlined_call_operand.hbm [shape: f32[2,16,512], index: 7, kind: output, shape index: {}]
  %s8 = sld [smem:[#allocation0]]
  $region61: #{tpu_custom_call.1} parent=0
    _
  %s10 = ssub.s32 1, %s8
  %s11 = scalar_select 0, %s10, %s8
  $region1: #{tpu_custom_call.1} parent=0
    #allocation2 [shape = 'u8[65536]{0}', space=vmem, size = 0x10000, scoped, tag = 'output window, operand 0']
    #allocation3 [shape = 's32[2]{0}', space=sflag, size = 0x8, scoped, tag = 'scoped memory for tpu_custom_call.1']
    %12 = vsyncpa [#allocation3], 0
    %s13 = scalar_lea.sflag [#allocation3], 1
    %14 = vsyncpa %s13, 0
    loop: start=0, step=1, limit=4
    $region2: #{tpu_custom_call.1} parent=1 // loop_pre_header
      _
    $region3: #{tpu_custom_call.1} parent=1 // loop_header
      %s16 = sphi 0, %s20
      %p17 = scmp.ge.s32.totalorder %s16, 4
      %s23 = sphi 0, %s35
      %s24 = sphi 0, %s31
      %s25 = sphi 0, %s23
      %s26 = sphi 0, %s24
      %s27 = sphi 0, %s25
      %s28 = sphi 0, %s26
      %s40 = sphi 0, %s42
      %s43 = sphi 0, %s40
      %s44 = sphi 0, %s43
      %s60 = sphi 0, %s44
      %s64 = sphi 0, %s64
      %s66 = sphi 0, %s64
      %s67 = sphi 0, %s66
      %s81 = sphi 0, %s67
      %s85 = sphi 0, %s85
      %s87 = sphi 0, %s85
      %s88 = sphi 0, %s87
      %s102 = sphi 0, %s88
      %s106 = sphi 0, %s106
      %s108 = sphi 0, %s106
      %s109 = sphi 0, %s108
      %s123 = sphi 0, %s109
      %s127 = sphi 0, %s127
      %s129 = sphi 0, %s127
      %s130 = sphi 0, %s129
      %s144 = sphi 0, %s130
      %s148 = sphi 0, %s148
      %s150 = sphi 0, %s148
      %s151 = sphi 0, %s150
      %s165 = sphi 0, %s151
      %s169 = sphi 0, %s169
      %s171 = sphi 0, %s169
      %s172 = sphi 0, %s171
      %s186 = sphi 0, %s172
      %s194 = sphi 0, %s196
      %s197 = sphi 0, %s194
      %s198 = sphi 0, %s197
      %s214 = sphi 0, %s198
    $region4: #{tpu_custom_call.1} parent=1 // loop_header_branch
      %19 = sbr.rel (%p17) target = $region8
    $region5: #{tpu_custom_call.1} parent=1 // loop_body
      %s21 = ssub.s32 %s16, 1
      %s22 = ssub.s32 %s16, 2
      %s29 = sadd.s32 1, %s24
      %p30 = scmp.ge.s32.totalorder %s29, 1
      %s31 = scalar_select %p30, 0, %s29
      %s32 = sadd.s32 1, %s23
      %s33 = scalar_select %p30, %s32, %s23
      %p34 = scmp.ge.s32.totalorder %s33, 2
      %s35 = scalar_select %p34, 0, %s33
      %s36 = ssub.s32 %s23, %s35
      %s37 = ssub.s32 %s24, %s31
      %s38 = sor.u32 %s36, %s37
      %p39 = scmp.eq.s32.totalorder %s38, 0
      %s41 = sadd.s32 %s40, 1
      %s42 = scalar_select %p39, %s40, %s41
      %p45 = pneg %p39
      %p46 = scmp.eq.s32.totalorder %s16, 1
      %p47 = por %p45, %p46
      %p48 = scmp.ne.s32.totalorder %s40, %s43
      %p49 = scmp.eq.s32.totalorder %s16, 0
      %p50 = por %p48, %p49
      %p51 = scmp.ne.s32.totalorder %s40, %s43
      %p52 = scmp.eq.s32.totalorder %s21, 1
      %p53 = por %p51, %p52
      %p54 = scmp.ne.s32.totalorder %s43, %s44
      %p55 = scmp.eq.s32.totalorder %s21, 0
      %p56 = por %p54, %p55
      %p57 = scmp.ne.s32.totalorder %s43, %s44
      %p58 = scmp.eq.s32.totalorder %s22, 1
      %p59 = por %p57, %p58
      %p61 = scmp.ne.s32.totalorder %s44, %s60
      %p62 = scmp.eq.s32.totalorder %s22, 0
      %p63 = por %p61, %p62
      %s65 = sadd.s32 %s64, 1
      %p68 = scmp.eq.s32.totalorder %s16, 1
      %p69 = scmp.ne.s32.totalorder %s64, %s66
      %p70 = scmp.eq.s32.totalorder %s16, 0
      %p71 = por %p69, %p70
      %p72 = scmp.ne.s32.totalorder %s64, %s66
      %p73 = scmp.eq.s32.totalorder %s21, 1
      %p74 = por %p72, %p73
      %p75 = scmp.ne.s32.totalorder %s66, %s67
      %p76 = scmp.eq.s32.totalorder %s21, 0
      %p77 = por %p75, %p76
      %p78 = scmp.ne.s32.totalorder %s66, %s67
      %p79 = scmp.eq.s32.totalorder %s22, 1
      %p80 = por %p78, %p79
      %p82 = scmp.ne.s32.totalorder %s67, %s81
      %p83 = scmp.eq.s32.totalorder %s22, 0
      %p84 = por %p82, %p83
      %s86 = sadd.s32 %s85, 1
      %p89 = scmp.eq.s32.totalorder %s16, 1
      %p90 = scmp.ne.s32.totalorder %s85, %s87
      %p91 = scmp.eq.s32.totalorder %s16, 0
      %p92 = por %p90, %p91
      %p93 = scmp.ne.s32.totalorder %s85, %s87
      %p94 = scmp.eq.s32.totalorder %s21, 1
      %p95 = por %p93, %p94
      %p96 = scmp.ne.s32.totalorder %s87, %s88
      %p97 = scmp.eq.s32.totalorder %s21, 0
      %p98 = por %p96, %p97
      %p99 = scmp.ne.s32.totalorder %s87, %s88
      %p100 = scmp.eq.s32.totalorder %s22, 1
      %p101 = por %p99, %p100
      %p103 = scmp.ne.s32.totalorder %s88, %s102
      %p104 = scmp.eq.s32.totalorder %s22, 0
      %p105 = por %p103, %p104
      %s107 = sadd.s32 %s106, 1
      %p110 = scmp.eq.s32.totalorder %s16, 1
      %p111 = scmp.ne.s32.totalorder %s106, %s108
      %p112 = scmp.eq.s32.totalorder %s16, 0
      %p113 = por %p111, %p112
      %p114 = scmp.ne.s32.totalorder %s106, %s108
      %p115 = scmp.eq.s32.totalorder %s21, 1
      %p116 = por %p114, %p115
      %p117 = scmp.ne.s32.totalorder %s108, %s109
      %p118 = scmp.eq.s32.totalorder %s21, 0
      %p119 = por %p117, %p118
      %p120 = scmp.ne.s32.totalorder %s108, %s109
      %p121 = scmp.eq.s32.totalorder %s22, 1
      %p122 = por %p120, %p121
      %p124 = scmp.ne.s32.totalorder %s109, %s123
      %p125 = scmp.eq.s32.totalorder %s22, 0
      %p126 = por %p124, %p125
      %s128 = sadd.s32 %s127, 1
      %p131 = scmp.eq.s32.totalorder %s16, 1
      %p132 = scmp.ne.s32.totalorder %s127, %s129
      %p133 = scmp.eq.s32.totalorder %s16, 0
      %p134 = por %p132, %p133
      %p135 = scmp.ne.s32.totalorder %s127, %s129
      %p136 = scmp.eq.s32.totalorder %s21, 1
      %p137 = por %p135, %p136
      %p138 = scmp.ne.s32.totalorder %s129, %s130
      %p139 = scmp.eq.s32.totalorder %s21, 0
      %p140 = por %p138, %p139
      %p141 = scmp.ne.s32.totalorder %s129, %s130
      %p142 = scmp.eq.s32.totalorder %s22, 1
      %p143 = por %p141, %p142
      %p145 = scmp.ne.s32.totalorder %s130, %s144
      %p146 = scmp.eq.s32.totalorder %s22, 0
      %p147 = por %p145, %p146
      %s149 = sadd.s32 %s148, 1
      %p152 = scmp.eq.s32.totalorder %s16, 1
      %p153 = scmp.ne.s32.totalorder %s148, %s150
      %p154 = scmp.eq.s32.totalorder %s16, 0
      %p155 = por %p153, %p154
      %p156 = scmp.ne.s32.totalorder %s148, %s150
      %p157 = scmp.eq.s32.totalorder %s21, 1
      %p158 = por %p156, %p157
      %p159 = scmp.ne.s32.totalorder %s150, %s151
      %p160 = scmp.eq.s32.totalorder %s21, 0
      %p161 = por %p159, %p160
      %p162 = scmp.ne.s32.totalorder %s150, %s151
      %p163 = scmp.eq.s32.totalorder %s22, 1
      %p164 = por %p162, %p163
      %p166 = scmp.ne.s32.totalorder %s151, %s165
      %p167 = scmp.eq.s32.totalorder %s22, 0
      %p168 = por %p166, %p167
      %s170 = sadd.s32 %s169, 1
      %p173 = scmp.eq.s32.totalorder %s16, 1
      %p174 = scmp.ne.s32.totalorder %s169, %s171
      %p175 = scmp.eq.s32.totalorder %s16, 0
      %p176 = por %p174, %p175
      %p177 = scmp.ne.s32.totalorder %s169, %s171
      %p178 = scmp.eq.s32.totalorder %s21, 1
      %p179 = por %p177, %p178
      %p180 = scmp.ne.s32.totalorder %s171, %s172
      %p181 = scmp.eq.s32.totalorder %s21, 0
      %p182 = por %p180, %p181
      %p183 = scmp.ne.s32.totalorder %s171, %s172
      %p184 = scmp.eq.s32.totalorder %s22, 1
      %p185 = por %p183, %p184
      %p187 = scmp.ne.s32.totalorder %s172, %s186
      %p188 = scmp.eq.s32.totalorder %s22, 0
      %p189 = por %p187, %p188
      %s190 = ssub.s32 %s23, %s35
      %s191 = ssub.s32 %s24, %s31
      %s192 = sor.u32 %s190, %s191
      %p193 = scmp.eq.s32.totalorder %s192, 0
      %s195 = sadd.s32 %s194, 1
      %s196 = scalar_select %p193, %s194, %s195
      %p199 = pneg %p193
      %p200 = scmp.eq.s32.totalorder %s16, 1
      %p201 = por %p199, %p200
      %p202 = scmp.ne.s32.totalorder %s194, %s197
      %p203 = scmp.eq.s32.totalorder %s16, 0
      %p204 = por %p202, %p203
      %p205 = scmp.ne.s32.totalorder %s194, %s197
      %p206 = scmp.eq.s32.totalorder %s21, 1
      %p207 = por %p205, %p206
      %p208 = scmp.ne.s32.totalorder %s197, %s198
      %p209 = scmp.eq.s32.totalorder %s21, 0
      %p210 = por %p208, %p209
      %p211 = scmp.ne.s32.totalorder %s197, %s198
      %p212 = scmp.eq.s32.totalorder %s22, 1
      %p213 = por %p211, %p212
      %p215 = scmp.ne.s32.totalorder %s198, %s214
      %p216 = scmp.eq.s32.totalorder %s22, 0
      %p217 = por %p215, %p216
      %p218 = scmp.le.s32.totalorder 1, %s16
      %p219 = scmp.lt.s32.totalorder %s16, 3
      %p220 = pnand %p218, %p219
      %p221 = pneg %p220
      // Predicated region
      $region9: #{tpu_custom_call.1} parent=5 // pred_check
        _
      $region10: #{tpu_custom_call.1} parent=5 // pred_check_branch
        %223 = sbr.rel (%p220) target = $region12
      $region11: #{tpu_custom_call.1} parent=5 // pred_region
        %s224 = ssub.s32 %s16, 1
        // Predicated region
        $region13: #{tpu_custom_call.1} parent=11 // pred_check
          %p225 = pneg %p77
        $region14: #{tpu_custom_call.1} parent=11 // pred_check_branch
          %227 = sbr.rel (%p225) target = $region16
        $region15: #{tpu_custom_call.1} parent=11 // pred_region
          _
        $region16: #{tpu_custom_call.1} parent=11 // pred_fallthru
          _
        // Predicated region
        $region17: #{tpu_custom_call.1} parent=11 // pred_check
          %p228 = pneg %p98
        $region18: #{tpu_custom_call.1} parent=11 // pred_check_branch
          %230 = sbr.rel (%p228) target = $region20
        $region19: #{tpu_custom_call.1} parent=11 // pred_region
          _
        $region20: #{tpu_custom_call.1} parent=11 // pred_fallthru
          _
        // Predicated region
        $region21: #{tpu_custom_call.1} parent=11 // pred_check
          %p231 = pneg %p119
        $region22: #{tpu_custom_call.1} parent=11 // pred_check_branch
          %233 = sbr.rel (%p231) target = $region24
        $region23: #{tpu_custom_call.1} parent=11 // pred_region
          _
        $region24: #{tpu_custom_call.1} parent=11 // pred_fallthru
          _
        // Predicated region
        $region25: #{tpu_custom_call.1} parent=11 // pred_check
          %p234 = pneg %p140
        $region26: #{tpu_custom_call.1} parent=11 // pred_check_branch
          %236 = sbr.rel (%p234) target = $region28
        $region27: #{tpu_custom_call.1} parent=11 // pred_region
          _
        $region28: #{tpu_custom_call.1} parent=11 // pred_fallthru
          _
        // Predicated region
        $region29: #{tpu_custom_call.1} parent=11 // pred_check
          %p237 = pneg %p161
        $region30: #{tpu_custom_call.1} parent=11 // pred_check_branch
          %239 = sbr.rel (%p237) target = $region32
        $region31: #{tpu_custom_call.1} parent=11 // pred_region
          _
        $region32: #{tpu_custom_call.1} parent=11 // pred_fallthru
          _
        // Predicated region
        $region33: #{tpu_custom_call.1} parent=11 // pred_check
          %p240 = pneg %p182
        $region34: #{tpu_custom_call.1} parent=11 // pred_check_branch
          %242 = sbr.rel (%p240) target = $region36
        $region35: #{tpu_custom_call.1} parent=11 // pred_region
          _
        $region36: #{tpu_custom_call.1} parent=11 // pred_fallthru
          _
      $region12: #{tpu_custom_call.1} parent=5 // pred_fallthru
        _
      %p243 = scmp.lt.s32.totalorder %s16, 2
      // Predicated region
      $region37: #{tpu_custom_call.1} parent=5 // pred_check
        %p244 = pneg %p243
      $region38: #{tpu_custom_call.1} parent=5 // pred_check_branch
        %246 = sbr.rel (%p244) target = $region40
      $region39: #{tpu_custom_call.1} parent=5 // pred_region
        // Predicated region
        $region41: #{tpu_custom_call.1} parent=39 // pred_check
          %p247 = pneg %p50
        $region42: #{tpu_custom_call.1} parent=39 // pred_check_branch
          %249 = sbr.rel (%p247) target = $region44
        $region43: #{tpu_custom_call.1} parent=39 // pred_region
          %s250 = smul.u32 4, %s24
          %p251 = scmp.lt.s32.totalorder %s23, 1
          %s252 = scalar_select %p251, %s23, 1
          %p253 = scmp.lt.s32.totalorder %s250, 3
          %s254 = scalar_select %p253, %s250, 3
          %s255 = smul.addr %s252, 16
          %s256 = sadd.s32 %s254, %s255
          %s257 = smul.addr %s256, 8
          %s258 = scalar_lea.vmem %s0, %s257
          %s259 = smul.u32 4, %s24
        $region44: #{tpu_custom_call.1} parent=39 // pred_fallthru
          _
      $region40: #{tpu_custom_call.1} parent=5 // pred_fallthru
        _
      %p260 = scmp.le.s32.totalorder 1, %s16
      %p261 = scmp.lt.s32.totalorder %s16, 3
      %p262 = pnand %p260, %p261
      %p263 = pneg %p262
      // Predicated region
      $region45: #{tpu_custom_call.1} parent=5 // pred_check
        _
      $region46: #{tpu_custom_call.1} parent=5 // pred_check_branch
        %265 = sbr.rel (%p262) target = $region48
      $region47: #{tpu_custom_call.1} parent=5 // pred_region
        %s266 = ssub.s32 %s16, 1
        %s267 = smul.u32 4, %s26
        %p268 = scmp.lt.s32.totalorder %s25, 1
        %s269 = scalar_select %p268, %s25, 1
        %p270 = scmp.lt.s32.totalorder %s267, 3
        %s271 = scalar_select %p270, %s267, 3
        %s272 = smul.addr %s269, 16
        %s273 = sadd.s32 %s271, %s272
        %s274 = smul.addr %s273, 8
        %s275 = scalar_lea.vmem %s0, %s274
        %p276 = pneg %p56
        %p277 = pneg %p53
        %p278 = pneg %p77
        %p279 = pneg %p74
        %p280 = pneg %p98
        %p281 = pneg %p95
        %p282 = pneg %p119
        %p283 = pneg %p116
        %p284 = pneg %p140
        %p285 = pneg %p137
        %p286 = pneg %p161
        %p287 = pneg %p158
        %p288 = pneg %p182
        %p289 = pneg %p179
        %p290 = pneg %p210
        %p291 = pneg %p207
        %s292 = sand.u32 %s197, 1
        %s293 = scalar_lea.sflag [#allocation3], %s292
        %s294 = sand.u32 %s197, 1
        %s295 = smul.addr %s294, 64
        %s296 = scalar_lea.vmem [#allocation2], %s295
        %s297 = smul.u32 4, %s26
        %p298 = scmp.lt.s32.totalorder %s25, 1
        %s299 = scalar_select %p298, %s25, 1
        %p300 = scmp.lt.s32.totalorder %s297, 3
        %s301 = scalar_select %p300, %s297, 3
        %s302 = smul.addr %s299, 16
        %s303 = sadd.s32 %s301, %s302
        %s304 = smul.addr %s303, 8
        %s305 = scalar_lea.vmem %s0, %s304
        %s306 = smul.u32 4, %s26
        %s307 = smul.u32 4, %s26
        %v308 = vld [vmem:[%s1] sm:$0xff]
        %v309 = vld [vmem:[%s1 + $0x8] sm:$0xff]
        %v310 = vld [vmem:[%s1 + $0x10] sm:$0xff]
        %v311 = vld [vmem:[%s1 + $0x18] sm:$0xff]
        %v312 = vld [vmem:[%s1 + $0x20] sm:$0xff]
        %v313 = vld [vmem:[%s1 + $0x28] sm:$0xff]
        %v314 = vld [vmem:[%s1 + $0x30] sm:$0xff]
        %v315 = vld [vmem:[%s1 + $0x38] sm:$0xff]
        %v316 = vld [vmem:[%s1 + $0x40] sm:$0xff]
        %v317 = vld [vmem:[%s1 + $0x48] sm:$0xff]
        %v318 = vld [vmem:[%s1 + $0x50] sm:$0xff]
        %v319 = vld [vmem:[%s1 + $0x58] sm:$0xff]
        %v320 = vld [vmem:[%s1 + $0x60] sm:$0xff]
        %v321 = vld [vmem:[%s1 + $0x68] sm:$0xff]
        %v322 = vld [vmem:[%s1 + $0x70] sm:$0xff]
        %v323 = vld [vmem:[%s1 + $0x78] sm:$0xff]
        %v324 = vld [vmem:[%s1 + $0x80] sm:$0xff]
        %v325 = vld [vmem:[%s1 + $0x88] sm:$0xff]
        %v326 = vld [vmem:[%s1 + $0x90] sm:$0xff]
        %v327 = vld [vmem:[%s1 + $0x98] sm:$0xff]
        %v328 = vld [vmem:[%s2] sm:$0xff]
        %v329 = vld [vmem:[%s2 + $0x8] sm:$0xff]
        %v330 = vld [vmem:[%s2 + $0x10] sm:$0xff]
        %v331 = vld [vmem:[%s2 + $0x18] sm:$0xff]
        %v332 = vld [vmem:[%s2 + $0x20] sm:$0xff]
        %v333 = vld [vmem:[%s2 + $0x28] sm:$0xff]
        %v334 = vld [vmem:[%s2 + $0x30] sm:$0xff]
        %v335 = vld [vmem:[%s2 + $0x38] sm:$0xff]
        %v336 = vld [vmem:[%s2 + $0x40] sm:$0xff]
        %v337 = vld [vmem:[%s2 + $0x48] sm:$0xff]
        %v338 = vld [vmem:[%s2 + $0x50] sm:$0xff]
        %v339 = vld [vmem:[%s2 + $0x58] sm:$0xff]
        %v340 = vld [vmem:[%s2 + $0x60] sm:$0xff]
        %v341 = vld [vmem:[%s2 + $0x68] sm:$0xff]
        %v342 = vld [vmem:[%s2 + $0x70] sm:$0xff]
        %v343 = vld [vmem:[%s2 + $0x78] sm:$0xff]
        %v344 = vld [vmem:[%s2 + $0x80] sm:$0xff]
        %v345 = vld [vmem:[%s2 + $0x88] sm:$0xff]
        %v346 = vld [vmem:[%s2 + $0x90] sm:$0xff]
        %v347 = vld [vmem:[%s2 + $0x98] sm:$0xff]
        %v348 = vld [vmem:[%s305] sm:$0xff]
        %v349 = vld [vmem:[%s305 + $0x8] sm:$0xff]
        %v350 = vld [vmem:[%s305 + $0x10] sm:$0xff]
        %v351 = vld [vmem:[%s305 + $0x18] sm:$0xff]
        %v352 = vld [vmem:[%s305 + $0x20] sm:$0xff]
        %v353 = vld [vmem:[%s305 + $0x28] sm:$0xff]
        %v354 = vld [vmem:[%s305 + $0x30] sm:$0xff]
        %v355 = vld [vmem:[%s305 + $0x38] sm:$0xff]
        %v356 = vld [vmem:[%s305 + $0x40] sm:$0xff]
        %v357 = vld [vmem:[%s305 + $0x48] sm:$0xff]
        %v358 = vld [vmem:[%s305 + $0x50] sm:$0xff]
        %v359 = vld [vmem:[%s305 + $0x58] sm:$0xff]
        %v360 = vld [vmem:[%s305 + $0x60] sm:$0xff]
        %v361 = vld [vmem:[%s305 + $0x68] sm:$0xff]
        %v362 = vld [vmem:[%s305 + $0x70] sm:$0xff]
        %v363 = vld [vmem:[%s305 + $0x78] sm:$0xff]
        %365 = vset.pattern.permute.xlu0 0
        %366 = vperm.xlu0 %365, %v328
        %v367 = vpop.permute.xlu0 %366
        %370 = vset.pattern.permute.xlu0 0
        %371 = vperm.xlu0 %370, %v329
        %v372 = vpop.permute.xlu0 %371
        %375 = vset.pattern.permute.xlu0 0
        %376 = vperm.xlu0 %375, %v330
        %v377 = vpop.permute.xlu0 %376
        %380 = vset.pattern.permute.xlu0 0
        %381 = vperm.xlu0 %380, %v331
        %v382 = vpop.permute.xlu0 %381
        %385 = vset.pattern.permute.xlu0 0
        %386 = vperm.xlu0 %385, %v332
        %v387 = vpop.permute.xlu0 %386
        %390 = vset.pattern.permute.xlu0 0
        %391 = vperm.xlu0 %390, %v333
        %v392 = vpop.permute.xlu0 %391
        %395 = vset.pattern.permute.xlu0 0
        %396 = vperm.xlu0 %395, %v334
        %v397 = vpop.permute.xlu0 %396
        %400 = vset.pattern.permute.xlu0 0
        %401 = vperm.xlu0 %400, %v335
        %v402 = vpop.permute.xlu0 %401
        %405 = vset.pattern.permute.xlu0 0
        %406 = vperm.xlu0 %405, %v336
        %v407 = vpop.permute.xlu0 %406
        %410 = vset.pattern.permute.xlu0 0
        %411 = vperm.xlu0 %410, %v337
        %v412 = vpop.permute.xlu0 %411
        %415 = vset.pattern.permute.xlu0 0
        %416 = vperm.xlu0 %415, %v338
        %v417 = vpop.permute.xlu0 %416
        %420 = vset.pattern.permute.xlu0 0
        %421 = vperm.xlu0 %420, %v339
        %v422 = vpop.permute.xlu0 %421
        %425 = vset.pattern.permute.xlu0 0
        %426 = vperm.xlu0 %425, %v340
        %v427 = vpop.permute.xlu0 %426
        %430 = vset.pattern.permute.xlu0 0
        %431 = vperm.xlu0 %430, %v341
        %v432 = vpop.permute.xlu0 %431
        %435 = vset.pattern.permute.xlu0 0
        %436 = vperm.xlu0 %435, %v342
        %v437 = vpop.permute.xlu0 %436
        %440 = vset.pattern.permute.xlu0 0
        %441 = vperm.xlu0 %440, %v343
        %v442 = vpop.permute.xlu0 %441
        %445 = vset.pattern.permute.xlu0 0
        %446 = vperm.xlu0 %445, %v344
        %v447 = vpop.permute.xlu0 %446
        %450 = vset.pattern.permute.xlu0 0
        %451 = vperm.xlu0 %450, %v345
        %v452 = vpop.permute.xlu0 %451
        %455 = vset.pattern.permute.xlu0 0
        %456 = vperm.xlu0 %455, %v346
        %v457 = vpop.permute.xlu0 %456
        %460 = vset.pattern.permute.xlu0 0
        %461 = vperm.xlu0 %460, %v347
        %v462 = vpop.permute.xlu0 %461
        %vm464 = vcmask 261120
        %v466 = vsel %vm464, %v308, 0
        %v469 = vsel %vm464, %v309, 0
        %v472 = vsel %vm464, %v310, 0
        %v475 = vsel %vm464, %v311, 0
        %v478 = vsel %vm464, %v312, 0
        %v481 = vsel %vm464, %v313, 0
        %v484 = vsel %vm464, %v314, 0
        %v487 = vsel %vm464, %v315, 0
        %v490 = vsel %vm464, %v316, 0
        %v493 = vsel %vm464, %v317, 0
        %v496 = vsel %vm464, %v318, 0
        %v499 = vsel %vm464, %v319, 0
        %v502 = vsel %vm464, %v320, 0
        %v505 = vsel %vm464, %v321, 0
        %v508 = vsel %vm464, %v322, 0
        %v511 = vsel %vm464, %v323, 0
        %v514 = vsel %vm464, %v324, 0
        %v517 = vsel %vm464, %v325, 0
        %v520 = vsel %vm464, %v326, 0
        %v523 = vsel %vm464, %v327, 0
        %525 = vmatprep.subr.mxu0 %v349
        %526 = vmatpush1.msra.mxu0 %v348
        %527 = vmatprep.subr.mxu0 %v353
        %528 = vmatpush1.msra.mxu0 %v352
        %529 = vmatprep.subr.mxu0 %v357
        %530 = vmatpush1.msra.mxu0 %v356
        %531 = vmatprep.subr.mxu0 %v361
        %532 = vmatpush1.msra.mxu0 %v360
        %533 = vmatprep.subr.mxu0 0.0
        %534 = vmatpush1.msra.mxu0 0.0
        %535 = vmatprep.subr.mxu0 0.0
        %536 = vmatpush1.msra.mxu0 0.0
        %537 = vmatprep.subr.mxu0 0.0
        %538 = vmatpush1.msra.mxu0 0.0
        %539 = vmatprep.subr.mxu0 0.0
        %540 = vmatpush1.msra.mxu0 0.0
        %541 = vmatprep.subr.mxu0 0.0
        %542 = vmatpush1.msra.mxu0 0.0
        %543 = vmatprep.subr.mxu0 0.0
        %544 = vmatpush1.msra.mxu0 0.0
        %545 = vmatprep.subr.mxu0 0.0
        %546 = vmatpush1.msra.mxu0 0.0
        %547 = vmatprep.subr.mxu0 0.0
        %548 = vmatpush1.msra.mxu0 0.0
        %549 = vmatprep.subr.mxu0 0.0
        %550 = vmatpush1.msra.mxu0 0.0
        %551 = vmatprep.subr.mxu0 0.0
        %552 = vmatpush1.msra.mxu0 0.0
        %553 = vmatprep.subr.mxu0 0.0
        %554 = vmatpush1.msra.mxu0 0.0
        %555 = vmatprep.subr.mxu0 0.0
        %556 = vmatpush1.msra.mxu0 0.0
        %557 = vmatprep.subr.mxu0 0.0
        %558 = vmatpush1.msra.mxu0 0.0
        %559 = vmatprep.subr.mxu0 0.0
        %560 = vmatpush1.msra.mxu0 0.0
        %561 = vmatprep.subr.mxu0 0.0
        %562 = vmatpush1.msra.mxu0 0.0
        %563 = vmatprep.subr.mxu0 0.0
        %564 = vmatpush1.msra.mxu0 0.0
        %565 = vmatprep.subr.mxu0 0.0
        %566 = vmatpush1.msra.mxu0 0.0
        %567 = vmatprep.subr.mxu0 0.0
        %568 = vmatpush1.msra.mxu0 0.0
        %569 = vmatprep.subr.mxu0 0.0
        %570 = vmatpush1.msra.mxu0 0.0
        %571 = vmatprep.subr.mxu0 0.0
        %572 = vmatpush1.msra.mxu0 0.0
        %573 = vmatprep.subr.mxu0 0.0
        %574 = vmatpush1.msra.mxu0 0.0
        %575 = vmatprep.subr.mxu0 0.0
        %576 = vmatpush1.msra.mxu0 0.0
        %577 = vmatprep.subr.mxu0 0.0
        %578 = vmatpush1.msra.mxu0 0.0
        %579 = vmatprep.subr.mxu0 0.0
        %580 = vmatpush1.msra.mxu0 0.0
        %581 = vmatprep.subr.mxu0 0.0
        %582 = vmatpush1.msra.mxu0 0.0
        %583 = vmatprep.subr.mxu0 0.0
        %584 = vmatpush1.msra.mxu0 0.0
        %585 = vmatprep.subr.mxu0 0.0
        %586 = vmatpush1.msra.mxu0 0.0
        %587 = vmatprep.subr.mxu0 0.0
        %588 = vmatpush1.msra.mxu0 0.0
        %589 = vmatprep.mubr.f32.mxu0 0.0
        %590 = vmatmul.mubr.f32.gmra.mrb[0].mxu0 %v466
        %v591 = vpop.f32.mrb[0].mxu0
        %v592 = vadd.f32 %v367, %v591
        %v593 = vpop.f32.mrb[0].mxu0
        %v594 = vadd.f32 %v367, %v593
        %595 = vmatprep.mubr.f32.mxu0 0.0
        %596 = vmatmul.mubr.f32.gmra.mrb[0].mxu0 %v469
        %v597 = vpop.f32.mrb[0].mxu0
        %v598 = vadd.f32 %v372, %v597
        %v599 = vpop.f32.mrb[0].mxu0
        %v600 = vadd.f32 %v372, %v599
        %601 = vmatprep.mubr.f32.mxu0 0.0
        %602 = vmatmul.mubr.f32.gmra.mrb[0].mxu0 %v472
        %v603 = vpop.f32.mrb[0].mxu0
        %v604 = vadd.f32 %v377, %v603
        %v605 = vpop.f32.mrb[0].mxu0
        %v606 = vadd.f32 %v377, %v605
        %607 = vmatprep.mubr.f32.mxu0 0.0
        %608 = vmatmul.mubr.f32.gmra.mrb[0].mxu0 %v475
        %v609 = vpop.f32.mrb[0].mxu0
        %v610 = vadd.f32 %v382, %v609
        %v611 = vpop.f32.mrb[0].mxu0
        %v612 = vadd.f32 %v382, %v611
        %613 = vmatprep.mubr.f32.mxu0 0.0
        %614 = vmatmul.mubr.f32.gmra.mrb[0].mxu0 %v478
        %v615 = vpop.f32.mrb[0].mxu0
        %v616 = vadd.f32 %v387, %v615
        %v617 = vpop.f32.mrb[0].mxu0
        %v618 = vadd.f32 %v387, %v617
        %619 = vmatprep.mubr.f32.mxu0 0.0
        %620 = vmatmul.mubr.f32.gmra.mrb[0].mxu0 %v481
        %v621 = vpop.f32.mrb[0].mxu0
        %v622 = vadd.f32 %v392, %v621
        %v623 = vpop.f32.mrb[0].mxu0
        %v624 = vadd.f32 %v392, %v623
        %625 = vmatprep.mubr.f32.mxu0 0.0
        %626 = vmatmul.mubr.f32.gmra.mrb[0].mxu0 %v484
        %v627 = vpop.f32.mrb[0].mxu0
        %v628 = vadd.f32 %v397, %v627
        %v629 = vpop.f32.mrb[0].mxu0
        %v630 = vadd.f32 %v397, %v629
        %631 = vmatprep.mubr.f32.mxu0 0.0
        %632 = vmatmul.mubr.f32.gmra.mrb[0].mxu0 %v487
        %v633 = vpop.f32.mrb[0].mxu0
        %v634 = vadd.f32 %v402, %v633
        %v635 = vpop.f32.mrb[0].mxu0
        %v636 = vadd.f32 %v402, %v635
        %637 = vmatprep.mubr.f32.mxu0 0.0
        %638 = vmatmul.mubr.f32.gmra.mrb[0].mxu0 %v490
        %v639 = vpop.f32.mrb[0].mxu0
        %v640 = vadd.f32 %v407, %v639
        %v641 = vpop.f32.mrb[0].mxu0
        %v642 = vadd.f32 %v407, %v641
        %643 = vmatprep.mubr.f32.mxu0 0.0
        %644 = vmatmul.mubr.f32.gmra.mrb[0].mxu0 %v493
        %v645 = vpop.f32.mrb[0].mxu0
        %v646 = vadd.f32 %v412, %v645
        %v647 = vpop.f32.mrb[0].mxu0
        %v648 = vadd.f32 %v412, %v647
        %649 = vmatprep.mubr.f32.mxu0 0.0
        %650 = vmatmul.mubr.f32.gmra.mrb[0].mxu0 %v496
        %v651 = vpop.f32.mrb[0].mxu0
        %v652 = vadd.f32 %v417, %v651
        %v653 = vpop.f32.mrb[0].mxu0
        %v654 = vadd.f32 %v417, %v653
        %655 = vmatprep.mubr.f32.mxu0 0.0
        %656 = vmatmul.mubr.f32.gmra.mrb[0].mxu0 %v499
        %v657 = vpop.f32.mrb[0].mxu0
        %v658 = vadd.f32 %v422, %v657
        %v659 = vpop.f32.mrb[0].mxu0
        %v660 = vadd.f32 %v422, %v659
        %661 = vmatprep.mubr.f32.mxu0 0.0
        %662 = vmatmul.mubr.f32.gmra.mrb[0].mxu0 %v502
        %v663 = vpop.f32.mrb[0].mxu0
        %v664 = vadd.f32 %v427, %v663
        %v665 = vpop.f32.mrb[0].mxu0
        %v666 = vadd.f32 %v427, %v665
        %667 = vmatprep.mubr.f32.mxu0 0.0
        %668 = vmatmul.mubr.f32.gmra.mrb[0].mxu0 %v505
        %v669 = vpop.f32.mrb[0].mxu0
        %v670 = vadd.f32 %v432, %v669
        %v671 = vpop.f32.mrb[0].mxu0
        %v672 = vadd.f32 %v432, %v671
        %673 = vmatprep.mubr.f32.mxu0 0.0
        %674 = vmatmul.mubr.f32.gmra.mrb[0].mxu0 %v508
        %v675 = vpop.f32.mrb[0].mxu0
        %v676 = vadd.f32 %v437, %v675
        %v677 = vpop.f32.mrb[0].mxu0
        %v678 = vadd.f32 %v437, %v677
        %679 = vmatprep.mubr.f32.mxu0 0.0
        %680 = vmatmul.mubr.f32.gmra.mrb[0].mxu0 %v511
        %v681 = vpop.f32.mrb[0].mxu0
        %v682 = vadd.f32 %v442, %v681
        %v683 = vpop.f32.mrb[0].mxu0
        %v684 = vadd.f32 %v442, %v683
        %685 = vmatprep.mubr.f32.mxu0 0.0
        %686 = vmatmul.mubr.f32.gmra.mrb[0].mxu0 %v514
        %v687 = vpop.f32.mrb[0].mxu0
        %v688 = vadd.f32 %v447, %v687
        %v689 = vpop.f32.mrb[0].mxu0
        %v690 = vadd.f32 %v447, %v689
        %691 = vmatprep.mubr.f32.mxu0 0.0
        %692 = vmatmul.mubr.f32.gmra.mrb[0].mxu0 %v517
        %v693 = vpop.f32.mrb[0].mxu0
        %v694 = vadd.f32 %v452, %v693
        %v695 = vpop.f32.mrb[0].mxu0
        %v696 = vadd.f32 %v452, %v695
        %697 = vmatprep.mubr.f32.mxu0 0.0
        %698 = vmatmul.mubr.f32.gmra.mrb[0].mxu0 %v520
        %v699 = vpop.f32.mrb[0].mxu0
        %v700 = vadd.f32 %v457, %v699
        %v701 = vpop.f32.mrb[0].mxu0
        %v702 = vadd.f32 %v457, %v701
        %703 = vmatprep.mubr.f32.mxu0 0.0
        %704 = vmatmul.mubr.f32.gmra.mrb[0].mxu0 %v523
        %v705 = vpop.f32.mrb[0].mxu0
        %v706 = vadd.f32 %v462, %v705
        %v707 = vpop.f32.mrb[0].mxu0
        %v708 = vadd.f32 %v462, %v707
        %709 = vdwg.mxu0
        %710 = vmatprep.subr.mxu0 %v351
        %711 = vmatpush1.msra.mxu0 %v350
        %712 = vmatprep.subr.mxu0 %v355
        %713 = vmatpush1.msra.mxu0 %v354
        %714 = vmatprep.subr.mxu0 %v359
        %715 = vmatpush1.msra.mxu0 %v358
        %716 = vmatprep.subr.mxu0 %v363
        %717 = vmatpush1.msra.mxu0 %v362
        %718 = vmatprep.subr.mxu0 0.0
        %719 = vmatpush1.msra.mxu0 0.0
        %720 = vmatprep.subr.mxu0 0.0
        %721 = vmatpush1.msra.mxu0 0.0
        %722 = vmatprep.subr.mxu0 0.0
        %723 = vmatpush1.msra.mxu0 0.0
        %724 = vmatprep.subr.mxu0 0.0
        %725 = vmatpush1.msra.mxu0 0.0
        %726 = vmatprep.subr.mxu0 0.0
        %727 = vmatpush1.msra.mxu0 0.0
        %728 = vmatprep.subr.mxu0 0.0
        %729 = vmatpush1.msra.mxu0 0.0
        %730 = vmatprep.subr.mxu0 0.0
        %731 = vmatpush1.msra.mxu0 0.0
        %732 = vmatprep.subr.mxu0 0.0
        %733 = vmatpush1.msra.mxu0 0.0
        %734 = vmatprep.subr.mxu0 0.0
        %735 = vmatpush1.msra.mxu0 0.0
        %736 = vmatprep.subr.mxu0 0.0
        %737 = vmatpush1.msra.mxu0 0.0
        %738 = vmatprep.subr.mxu0 0.0
        %739 = vmatpush1.msra.mxu0 0.0
        %740 = vmatprep.subr.mxu0 0.0
        %741 = vmatpush1.msra.mxu0 0.0
        %742 = vmatprep.subr.mxu0 0.0
        %743 = vmatpush1.msra.mxu0 0.0
        %744 = vmatprep.subr.mxu0 0.0
        %745 = vmatpush1.msra.mxu0 0.0
        %746 = vmatprep.subr.mxu0 0.0
        %747 = vmatpush1.msra.mxu0 0.0
        %748 = vmatprep.subr.mxu0 0.0
        %749 = vmatpush1.msra.mxu0 0.0
        %750 = vmatprep.subr.mxu0 0.0
        %751 = vmatpush1.msra.mxu0 0.0
        %752 = vmatprep.subr.mxu0 0.0
        %753 = vmatpush1.msra.mxu0 0.0
        %754 = vmatprep.subr.mxu0 0.0
        %755 = vmatpush1.msra.mxu0 0.0
        %756 = vmatprep.subr.mxu0 0.0
        %757 = vmatpush1.msra.mxu0 0.0
        %758 = vmatprep.subr.mxu0 0.0
        %759 = vmatpush1.msra.mxu0 0.0
        %760 = vmatprep.subr.mxu0 0.0
        %761 = vmatpush1.msra.mxu0 0.0
        %762 = vmatprep.subr.mxu0 0.0
        %763 = vmatpush1.msra.mxu0 0.0
        %764 = vmatprep.subr.mxu0 0.0
        %765 = vmatpush1.msra.mxu0 0.0
        %766 = vmatprep.subr.mxu0 0.0
        %767 = vmatpush1.msra.mxu0 0.0
        %768 = vmatprep.subr.mxu0 0.0
        %769 = vmatpush1.msra.mxu0 0.0
        %770 = vmatprep.subr.mxu0 0.0
        %771 = vmatpush1.msra.mxu0 0.0
        %772 = vmatprep.subr.mxu0 0.0
        %773 = vmatpush1.msra.mxu0 0.0
        %774 = vmatprep.mubr.f32.mxu0 0.0
        %775 = vmatmul.mubr.f32.gmra.mrb[0].mxu0 %v466
        %v776 = vpop.f32.mrb[0].mxu0
        %v777 = vadd.f32 %v367, %v776
        %v778 = vpop.f32.mrb[0].mxu0
        %v779 = vadd.f32 %v367, %v778
        %780 = vmatprep.mubr.f32.mxu0 0.0
        %781 = vmatmul.mubr.f32.gmra.mrb[0].mxu0 %v469
        %v782 = vpop.f32.mrb[0].mxu0
        %v783 = vadd.f32 %v372, %v782
        %v784 = vpop.f32.mrb[0].mxu0
        %v785 = vadd.f32 %v372, %v784
        %786 = vmatprep.mubr.f32.mxu0 0.0
        %787 = vmatmul.mubr.f32.gmra.mrb[0].mxu0 %v472
        %v788 = vpop.f32.mrb[0].mxu0
        %v789 = vadd.f32 %v377, %v788
        %v790 = vpop.f32.mrb[0].mxu0
        %v791 = vadd.f32 %v377, %v790
        %792 = vmatprep.mubr.f32.mxu0 0.0
        %793 = vmatmul.mubr.f32.gmra.mrb[0].mxu0 %v475
        %v794 = vpop.f32.mrb[0].mxu0
        %v795 = vadd.f32 %v382, %v794
        %v796 = vpop.f32.mrb[0].mxu0
        %v797 = vadd.f32 %v382, %v796
        %798 = vmatprep.mubr.f32.mxu0 0.0
        %799 = vmatmul.mubr.f32.gmra.mrb[0].mxu0 %v478
        %v800 = vpop.f32.mrb[0].mxu0
        %v801 = vadd.f32 %v387, %v800
        %v802 = vpop.f32.mrb[0].mxu0
        %v803 = vadd.f32 %v387, %v802
        %804 = vmatprep.mubr.f32.mxu0 0.0
        %805 = vmatmul.mubr.f32.gmra.mrb[0].mxu0 %v481
        %v806 = vpop.f32.mrb[0].mxu0
        %v807 = vadd.f32 %v392, %v806
        %v808 = vpop.f32.mrb[0].mxu0
        %v809 = vadd.f32 %v392, %v808
        %810 = vmatprep.mubr.f32.mxu0 0.0
        %811 = vmatmul.mubr.f32.gmra.mrb[0].mxu0 %v484
        %v812 = vpop.f32.mrb[0].mxu0
        %v813 = vadd.f32 %v397, %v812
        %v814 = vpop.f32.mrb[0].mxu0
        %v815 = vadd.f32 %v397, %v814
        %816 = vmatprep.mubr.f32.mxu0 0.0
        %817 = vmatmul.mubr.f32.gmra.mrb[0].mxu0 %v487
        %v818 = vpop.f32.mrb[0].mxu0
        %v819 = vadd.f32 %v402, %v818
        %v820 = vpop.f32.mrb[0].mxu0
        %v821 = vadd.f32 %v402, %v820
        %822 = vmatprep.mubr.f32.mxu0 0.0
        %823 = vmatmul.mubr.f32.gmra.mrb[0].mxu0 %v490
        %v824 = vpop.f32.mrb[0].mxu0
        %v825 = vadd.f32 %v407, %v824
        %v826 = vpop.f32.mrb[0].mxu0
        %v827 = vadd.f32 %v407, %v826
        %828 = vmatprep.mubr.f32.mxu0 0.0
        %829 = vmatmul.mubr.f32.gmra.mrb[0].mxu0 %v493
        %v830 = vpop.f32.mrb[0].mxu0
        %v831 = vadd.f32 %v412, %v830
        %v832 = vpop.f32.mrb[0].mxu0
        %v833 = vadd.f32 %v412, %v832
        %834 = vmatprep.mubr.f32.mxu0 0.0
        %835 = vmatmul.mubr.f32.gmra.mrb[0].mxu0 %v496
        %v836 = vpop.f32.mrb[0].mxu0
        %v837 = vadd.f32 %v417, %v836
        %v838 = vpop.f32.mrb[0].mxu0
        %v839 = vadd.f32 %v417, %v838
        %840 = vmatprep.mubr.f32.mxu0 0.0
        %841 = vmatmul.mubr.f32.gmra.mrb[0].mxu0 %v499
        %v842 = vpop.f32.mrb[0].mxu0
        %v843 = vadd.f32 %v422, %v842
        %v844 = vpop.f32.mrb[0].mxu0
        %v845 = vadd.f32 %v422, %v844
        %846 = vmatprep.mubr.f32.mxu0 0.0
        %847 = vmatmul.mubr.f32.gmra.mrb[0].mxu0 %v502
        %v848 = vpop.f32.mrb[0].mxu0
        %v849 = vadd.f32 %v427, %v848
        %v850 = vpop.f32.mrb[0].mxu0
        %v851 = vadd.f32 %v427, %v850
        %852 = vmatprep.mubr.f32.mxu0 0.0
        %853 = vmatmul.mubr.f32.gmra.mrb[0].mxu0 %v505
        %v854 = vpop.f32.mrb[0].mxu0
        %v855 = vadd.f32 %v432, %v854
        %v856 = vpop.f32.mrb[0].mxu0
        %v857 = vadd.f32 %v432, %v856
        %858 = vmatprep.mubr.f32.mxu0 0.0
        %859 = vmatmul.mubr.f32.gmra.mrb[0].mxu0 %v508
        %v860 = vpop.f32.mrb[0].mxu0
        %v861 = vadd.f32 %v437, %v860
        %v862 = vpop.f32.mrb[0].mxu0
        %v863 = vadd.f32 %v437, %v862
        %864 = vmatprep.mubr.f32.mxu0 0.0
        %865 = vmatmul.mubr.f32.gmra.mrb[0].mxu0 %v511
        %v866 = vpop.f32.mrb[0].mxu0
        %v867 = vadd.f32 %v442, %v866
        %v868 = vpop.f32.mrb[0].mxu0
        %v869 = vadd.f32 %v442, %v868
        %870 = vmatprep.mubr.f32.mxu0 0.0
        %871 = vmatmul.mubr.f32.gmra.mrb[0].mxu0 %v514
        %v872 = vpop.f32.mrb[0].mxu0
        %v873 = vadd.f32 %v447, %v872
        %v874 = vpop.f32.mrb[0].mxu0
        %v875 = vadd.f32 %v447, %v874
        %876 = vmatprep.mubr.f32.mxu0 0.0
        %877 = vmatmul.mubr.f32.gmra.mrb[0].mxu0 %v517
        %v878 = vpop.f32.mrb[0].mxu0
        %v879 = vadd.f32 %v452, %v878
        %v880 = vpop.f32.mrb[0].mxu0
        %v881 = vadd.f32 %v452, %v880
        %882 = vmatprep.mubr.f32.mxu0 0.0
        %883 = vmatmul.mubr.f32.gmra.mrb[0].mxu0 %v520
        %v884 = vpop.f32.mrb[0].mxu0
        %v885 = vadd.f32 %v457, %v884
        %v886 = vpop.f32.mrb[0].mxu0
        %v887 = vadd.f32 %v457, %v886
        %888 = vmatprep.mubr.f32.mxu0 0.0
        %889 = vmatmul.mubr.f32.gmra.mrb[0].mxu0 %v523
        %v890 = vpop.f32.mrb[0].mxu0
        %v891 = vadd.f32 %v462, %v890
        %v892 = vpop.f32.mrb[0].mxu0
        %v893 = vadd.f32 %v462, %v892
        %894 = vdwg.mxu0
        %v895 = vmax.f32 %v592, 0.0
        %v896 = vmax.f32 %v594, 0.0
        %v897 = vmax.f32 %v777, 0.0
        %v898 = vmax.f32 %v779, 0.0
        %v899 = vmax.f32 %v598, 0.0
        %v900 = vmax.f32 %v600, 0.0
        %v901 = vmax.f32 %v783, 0.0
        %v902 = vmax.f32 %v785, 0.0
        %v903 = vmax.f32 %v604, 0.0
        %v904 = vmax.f32 %v606, 0.0
        %v905 = vmax.f32 %v789, 0.0
        %v906 = vmax.f32 %v791, 0.0
        %v907 = vmax.f32 %v610, 0.0
        %v908 = vmax.f32 %v612, 0.0
        %v909 = vmax.f32 %v795, 0.0
        %v910 = vmax.f32 %v797, 0.0
        %v911 = vmax.f32 %v616, 0.0
        %v912 = vmax.f32 %v618, 0.0
        %v913 = vmax.f32 %v801, 0.0
        %v914 = vmax.f32 %v803, 0.0
        %v915 = vmax.f32 %v622, 0.0
        %v916 = vmax.f32 %v624, 0.0
        %v917 = vmax.f32 %v807, 0.0
        %v918 = vmax.f32 %v809, 0.0
        %v919 = vmax.f32 %v628, 0.0
        %v920 = vmax.f32 %v630, 0.0
        %v921 = vmax.f32 %v813, 0.0
        %v922 = vmax.f32 %v815, 0.0
        %v923 = vmax.f32 %v634, 0.0
        %v924 = vmax.f32 %v636, 0.0
        %v925 = vmax.f32 %v819, 0.0
        %v926 = vmax.f32 %v821, 0.0
        %v927 = vmax.f32 %v640, 0.0
        %v928 = vmax.f32 %v642, 0.0
        %v929 = vmax.f32 %v825, 0.0
        %v930 = vmax.f32 %v827, 0.0
        %v931 = vmax.f32 %v646, 0.0
        %v932 = vmax.f32 %v648, 0.0
        %v933 = vmax.f32 %v831, 0.0
        %v934 = vmax.f32 %v833, 0.0
        %v935 = vmax.f32 %v652, 0.0
        %v936 = vmax.f32 %v654, 0.0
        %v937 = vmax.f32 %v837, 0.0
        %v938 = vmax.f32 %v839, 0.0
        %v939 = vmax.f32 %v658, 0.0
        %v940 = vmax.f32 %v660, 0.0
        %v941 = vmax.f32 %v843, 0.0
        %v942 = vmax.f32 %v845, 0.0
        %v943 = vmax.f32 %v664, 0.0
        %v944 = vmax.f32 %v666, 0.0
        %v945 = vmax.f32 %v849, 0.0
        %v946 = vmax.f32 %v851, 0.0
        %v947 = vmax.f32 %v670, 0.0
        %v948 = vmax.f32 %v672, 0.0
        %v949 = vmax.f32 %v855, 0.0
        %v950 = vmax.f32 %v857, 0.0
        %v951 = vmax.f32 %v676, 0.0
        %v952 = vmax.f32 %v678, 0.0
        %v953 = vmax.f32 %v861, 0.0
        %v954 = vmax.f32 %v863, 0.0
        %v955 = vmax.f32 %v682, 0.0
        %v956 = vmax.f32 %v684, 0.0
        %v957 = vmax.f32 %v867, 0.0
        %v958 = vmax.f32 %v869, 0.0
        %v959 = vmax.f32 %v688, 0.0
        %v960 = vmax.f32 %v690, 0.0
        %v961 = vmax.f32 %v873, 0.0
        %v962 = vmax.f32 %v875, 0.0
        %v963 = vmax.f32 %v694, 0.0
        %v964 = vmax.f32 %v696, 0.0
        %v965 = vmax.f32 %v879, 0.0
        %v966 = vmax.f32 %v881, 0.0
        %v967 = vmax.f32 %v700, 0.0
        %v968 = vmax.f32 %v702, 0.0
        %v969 = vmax.f32 %v885, 0.0
        %v970 = vmax.f32 %v887, 0.0
        %v971 = vmax.f32 %v706, 0.0
        %v972 = vmax.f32 %v708, 0.0
        %v973 = vmax.f32 %v891, 0.0
        %v974 = vmax.f32 %v893, 0.0
        %v975 = vld [vmem:[%s3] sm:$0xff]
        %v976 = vld [vmem:[%s3 + $0x8] sm:$0xff]
        %v977 = vld [vmem:[%s3 + $0x10] sm:$0xff]
        %v978 = vld [vmem:[%s3 + $0x18] sm:$0xff]
        %v979 = vld [vmem:[%s4] sm:$0xff]
        %v980 = vld [vmem:[%s4 + $0x8] sm:$0xff]
        %v981 = vld [vmem:[%s4 + $0x10] sm:$0xff]
        %v982 = vld [vmem:[%s4 + $0x18] sm:$0xff]
        %984 = vset.pattern.permute.xlu0 0
        %985 = vperm.xlu0 %984, %v979
        %v986 = vpop.permute.xlu0 %985
        %989 = vset.pattern.permute.xlu0 0
        %990 = vperm.xlu0 %989, %v980
        %v991 = vpop.permute.xlu0 %990
        %994 = vset.pattern.permute.xlu0 0
        %995 = vperm.xlu0 %994, %v981
        %v996 = vpop.permute.xlu0 %995
        %999 = vset.pattern.permute.xlu0 0
        %1000 = vperm.xlu0 %999, %v982
        %v1001 = vpop.permute.xlu0 %1000
        %v1004 = vsel %vm464, %v975, 0
        %v1007 = vsel %vm464, %v976, 0
        %v1010 = vsel %vm464, %v977, 0
        %v1013 = vsel %vm464, %v978, 0
        %1015 = vmatprep.subr.mxu0 %v928
        %1016 = vmatpush1.msra.mxu0 %v927
        %1017 = vmatprep.subr.mxu0 %v932
        %1018 = vmatpush1.msra.mxu0 %v931
        %1019 = vmatprep.subr.mxu0 %v936
        %1020 = vmatpush1.msra.mxu0 %v935
        %1021 = vmatprep.subr.mxu0 %v940
        %1022 = vmatpush1.msra.mxu0 %v939
        %1023 = vmatprep.subr.mxu0 0.0
        %1024 = vmatpush1.msra.mxu0 0.0
        %1025 = vmatprep.subr.mxu0 0.0
        %1026 = vmatpush1.msra.mxu0 0.0
        %1027 = vmatprep.subr.mxu0 0.0
        %1028 = vmatpush1.msra.mxu0 0.0
        %1029 = vmatprep.subr.mxu0 0.0
        %1030 = vmatpush1.msra.mxu0 0.0
        %1031 = vmatprep.subr.mxu0 0.0
        %1032 = vmatpush1.msra.mxu0 0.0
        %1033 = vmatprep.subr.mxu0 0.0
        %1034 = vmatpush1.msra.mxu0 0.0
        %1035 = vmatprep.subr.mxu0 0.0
        %1036 = vmatpush1.msra.mxu0 0.0
        %1037 = vmatprep.subr.mxu0 0.0
        %1038 = vmatpush1.msra.mxu0 0.0
        %1039 = vmatprep.subr.mxu0 0.0
        %1040 = vmatpush1.msra.mxu0 0.0
        %1041 = vmatprep.subr.mxu0 0.0
        %1042 = vmatpush1.msra.mxu0 0.0
        %1043 = vmatprep.subr.mxu0 0.0
        %1044 = vmatpush1.msra.mxu0 0.0
        %1045 = vmatprep.subr.mxu0 0.0
        %1046 = vmatpush1.msra.mxu0 0.0
        %1047 = vmatprep.subr.mxu0 0.0
        %1048 = vmatpush1.msra.mxu0 0.0
        %1049 = vmatprep.subr.mxu0 0.0
        %1050 = vmatpush1.msra.mxu0 0.0
        %1051 = vmatprep.subr.mxu0 0.0
        %1052 = vmatpush1.msra.mxu0 0.0
        %1053 = vmatprep.subr.mxu0 0.0
        %1054 = vmatpush1.msra.mxu0 0.0
        %1055 = vmatprep.subr.mxu0 0.0
        %1056 = vmatpush1.msra.mxu0 0.0
        %1057 = vmatprep.subr.mxu0 0.0
        %1058 = vmatpush1.msra.mxu0 0.0
        %1059 = vmatprep.subr.mxu0 0.0
        %1060 = vmatpush1.msra.mxu0 0.0
        %1061 = vmatprep.subr.mxu0 0.0
        %1062 = vmatpush1.msra.mxu0 0.0
        %1063 = vmatprep.subr.mxu0 0.0
        %1064 = vmatpush1.msra.mxu0 0.0
        %1065 = vmatprep.subr.mxu0 0.0
        %1066 = vmatpush1.msra.mxu0 0.0
        %1067 = vmatprep.subr.mxu0 0.0
        %1068 = vmatpush1.msra.mxu0 0.0
        %1069 = vmatprep.subr.mxu0 0.0
        %1070 = vmatpush1.msra.mxu0 0.0
        %1071 = vmatprep.subr.mxu0 0.0
        %1072 = vmatpush1.msra.mxu0 0.0
        %1073 = vmatprep.subr.mxu0 0.0
        %1074 = vmatpush1.msra.mxu0 0.0
        %1075 = vmatprep.subr.mxu0 0.0
        %1076 = vmatpush1.msra.mxu0 0.0
        %1077 = vmatprep.subr.mxu0 0.0
        %1078 = vmatpush1.msra.mxu0 0.0
        %1079 = vmatprep.mubr.f32.mxu0 0.0
        %1080 = vmatmul.mubr.f32.gmra.mrb[0].mxu0 %v1004
        %v1081 = vpop.f32.mrb[0].mxu0
        %v1082 = vadd.f32 %v986, %v1081
        %v1083 = vpop.f32.mrb[0].mxu0
        %v1084 = vadd.f32 %v986, %v1083
        %1085 = vmatprep.mubr.f32.mxu0 0.0
        %1086 = vmatmul.mubr.f32.gmra.mrb[0].mxu0 %v1007
        %v1087 = vpop.f32.mrb[0].mxu0
        %v1088 = vadd.f32 %v991, %v1087
        %v1089 = vpop.f32.mrb[0].mxu0
        %v1090 = vadd.f32 %v991, %v1089
        %1091 = vmatprep.mubr.f32.mxu0 0.0
        %1092 = vmatmul.mubr.f32.gmra.mrb[0].mxu0 %v1010
        %v1093 = vpop.f32.mrb[0].mxu0
        %v1094 = vadd.f32 %v996, %v1093
        %v1095 = vpop.f32.mrb[0].mxu0
        %v1096 = vadd.f32 %v996, %v1095
        %1097 = vmatprep.mubr.f32.mxu0 0.0
        %1098 = vmatmul.mubr.f32.gmra.mrb[0].mxu0 %v1013
        %v1099 = vpop.f32.mrb[0].mxu0
        %v1100 = vadd.f32 %v1001, %v1099
        %v1101 = vpop.f32.mrb[0].mxu0
        %v1102 = vadd.f32 %v1001, %v1101
        %1103 = vdwg.mxu0
        %1104 = vmatprep.subr.mxu0 %v930
        %1105 = vmatpush1.msra.mxu0 %v929
        %1106 = vmatprep.subr.mxu0 %v934
        %1107 = vmatpush1.msra.mxu0 %v933
        %1108 = vmatprep.subr.mxu0 %v938
        %1109 = vmatpush1.msra.mxu0 %v937
        %1110 = vmatprep.subr.mxu0 %v942
        %1111 = vmatpush1.msra.mxu0 %v941
        %1112 = vmatprep.subr.mxu0 0.0
        %1113 = vmatpush1.msra.mxu0 0.0
        %1114 = vmatprep.subr.mxu0 0.0
        %1115 = vmatpush1.msra.mxu0 0.0
        %1116 = vmatprep.subr.mxu0 0.0
        %1117 = vmatpush1.msra.mxu0 0.0
        %1118 = vmatprep.subr.mxu0 0.0
        %1119 = vmatpush1.msra.mxu0 0.0
        %1120 = vmatprep.subr.mxu0 0.0
        %1121 = vmatpush1.msra.mxu0 0.0
        %1122 = vmatprep.subr.mxu0 0.0
        %1123 = vmatpush1.msra.mxu0 0.0
        %1124 = vmatprep.subr.mxu0 0.0
        %1125 = vmatpush1.msra.mxu0 0.0
        %1126 = vmatprep.subr.mxu0 0.0
        %1127 = vmatpush1.msra.mxu0 0.0
        %1128 = vmatprep.subr.mxu0 0.0
        %1129 = vmatpush1.msra.mxu0 0.0
        %1130 = vmatprep.subr.mxu0 0.0
        %1131 = vmatpush1.msra.mxu0 0.0
        %1132 = vmatprep.subr.mxu0 0.0
        %1133 = vmatpush1.msra.mxu0 0.0
        %1134 = vmatprep.subr.mxu0 0.0
        %1135 = vmatpush1.msra.mxu0 0.0
        %1136 = vmatprep.subr.mxu0 0.0
        %1137 = vmatpush1.msra.mxu0 0.0
        %1138 = vmatprep.subr.mxu0 0.0
        %1139 = vmatpush1.msra.mxu0 0.0
        %1140 = vmatprep.subr.mxu0 0.0
        %1141 = vmatpush1.msra.mxu0 0.0
        %1142 = vmatprep.subr.mxu0 0.0
        %1143 = vmatpush1.msra.mxu0 0.0
        %1144 = vmatprep.subr.mxu0 0.0
        %1145 = vmatpush1.msra.mxu0 0.0
        %1146 = vmatprep.subr.mxu0 0.0
        %1147 = vmatpush1.msra.mxu0 0.0
        %1148 = vmatprep.subr.mxu0 0.0
        %1149 = vmatpush1.msra.mxu0 0.0
        %1150 = vmatprep.subr.mxu0 0.0
        %1151 = vmatpush1.msra.mxu0 0.0
        %1152 = vmatprep.subr.mxu0 0.0
        %1153 = vmatpush1.msra.mxu0 0.0
        %1154 = vmatprep.subr.mxu0 0.0
        %1155 = vmatpush1.msra.mxu0 0.0
        %1156 = vmatprep.subr.mxu0 0.0
        %1157 = vmatpush1.msra.mxu0 0.0
        %1158 = vmatprep.subr.mxu0 0.0
        %1159 = vmatpush1.msra.mxu0 0.0
        %1160 = vmatprep.subr.mxu0 0.0
        %1161 = vmatpush1.msra.mxu0 0.0
        %1162 = vmatprep.subr.mxu0 0.0
        %1163 = vmatpush1.msra.mxu0 0.0
        %1164 = vmatprep.subr.mxu0 0.0
        %1165 = vmatpush1.msra.mxu0 0.0
        %1166 = vmatprep.subr.mxu0 0.0
        %1167 = vmatpush1.msra.mxu0 0.0
        %1168 = vmatprep.mubr.f32.mxu0 0.0
        %1169 = vmatmul.mubr.f32.gmra.mrb[0].mxu0 %v1004
        %v1170 = vpop.f32.mrb[0].mxu0
        %v1171 = vadd.f32 %v986, %v1170
        %v1172 = vpop.f32.mrb[0].mxu0
        %v1173 = vadd.f32 %v986, %v1172
        %1174 = vmatprep.mubr.f32.mxu0 0.0
        %1175 = vmatmul.mubr.f32.gmra.mrb[0].mxu0 %v1007
        %v1176 = vpop.f32.mrb[0].mxu0
        %v1177 = vadd.f32 %v991, %v1176
        %v1178 = vpop.f32.mrb[0].mxu0
        %v1179 = vadd.f32 %v991, %v1178
        %1180 = vmatprep.mubr.f32.mxu0 0.0
        %1181 = vmatmul.mubr.f32.gmra.mrb[0].mxu0 %v1010
        %v1182 = vpop.f32.mrb[0].mxu0
        %v1183 = vadd.f32 %v996, %v1182
        %v1184 = vpop.f32.mrb[0].mxu0
        %v1185 = vadd.f32 %v996, %v1184
        %1186 = vmatprep.mubr.f32.mxu0 0.0
        %1187 = vmatmul.mubr.f32.gmra.mrb[0].mxu0 %v1013
        %v1188 = vpop.f32.mrb[0].mxu0
        %v1189 = vadd.f32 %v1001, %v1188
        %v1190 = vpop.f32.mrb[0].mxu0
        %v1191 = vadd.f32 %v1001, %v1190
        %1192 = vdwg.mxu0
        %v1193 = vmax.f32 %v1082, 0.0
        %v1194 = vmax.f32 %v1084, 0.0
        %v1195 = vmax.f32 %v1171, 0.0
        %v1196 = vmax.f32 %v1173, 0.0
        %v1197 = vmax.f32 %v1088, 0.0
        %v1198 = vmax.f32 %v1090, 0.0
        %v1199 = vmax.f32 %v1177, 0.0
        %v1200 = vmax.f32 %v1179, 0.0
        %v1201 = vmax.f32 %v1094, 0.0
        %v1202 = vmax.f32 %v1096, 0.0
        %v1203 = vmax.f32 %v1183, 0.0
        %v1204 = vmax.f32 %v1185, 0.0
        %v1205 = vmax.f32 %v1100, 0.0
        %v1206 = vmax.f32 %v1102, 0.0
        %v1207 = vmax.f32 %v1189, 0.0
        %v1208 = vmax.f32 %v1191, 0.0
        %v1209 = vld [vmem:[%s5] sm:$0xff]
        %v1210 = vld [vmem:[%s5 + $0x8] sm:$0xff]
        %v1211 = vld [vmem:[%s5 + $0x10] sm:$0xff]
        %v1212 = vld [vmem:[%s5 + $0x18] sm:$0xff]
        %v1213 = vld [vmem:[%s6] sm:$0xff]
        %v1214 = vld [vmem:[%s6 + $0x8] sm:$0xff]
        %1216 = vset.pattern.permute.xlu0 0
        %1217 = vperm.xlu0 %1216, %v1213
        %v1218 = vpop.permute.xlu0 %1217
        %1221 = vset.pattern.permute.xlu0 0
        %1222 = vperm.xlu0 %1221, %v1214
        %v1223 = vpop.permute.xlu0 %1222
        %v1226 = vsel %vm464, %v1210, 0
        %v1229 = vsel %vm464, %v1212, 0
        %1231 = vmatprep.subr.mxu0 %v896
        %1232 = vmatpush1.msra.mxu0 %v895
        %1233 = vmatprep.subr.mxu0 %v900
        %1234 = vmatpush1.msra.mxu0 %v899
        %1235 = vmatprep.subr.mxu0 %v904
        %1236 = vmatpush1.msra.mxu0 %v903
        %1237 = vmatprep.subr.mxu0 %v908
        %1238 = vmatpush1.msra.mxu0 %v907
        %1239 = vmatprep.subr.mxu0 %v912
        %1240 = vmatpush1.msra.mxu0 %v911
        %1241 = vmatprep.subr.mxu0 %v916
        %1242 = vmatpush1.msra.mxu0 %v915
        %1243 = vmatprep.subr.mxu0 %v920
        %1244 = vmatpush1.msra.mxu0 %v919
        %1245 = vmatprep.subr.mxu0 %v924
        %1246 = vmatpush1.msra.mxu0 %v923
        %1247 = vmatprep.subr.mxu0 %v1194
        %1248 = vmatpush1.msra.mxu0 %v1193
        %1249 = vmatprep.subr.mxu0 %v1198
        %1250 = vmatpush1.msra.mxu0 %v1197
        %1251 = vmatprep.subr.mxu0 %v1202
        %1252 = vmatpush1.msra.mxu0 %v1201
        %1253 = vmatprep.subr.mxu0 %v1206
        %1254 = vmatpush1.msra.mxu0 %v1205
        %1255 = vmatprep.subr.mxu0 %v944
        %1256 = vmatpush1.msra.mxu0 %v943
        %1257 = vmatprep.subr.mxu0 %v948
        %1258 = vmatpush1.msra.mxu0 %v947
        %1259 = vmatprep.subr.mxu0 %v952
        %1260 = vmatpush1.msra.mxu0 %v951
        %1261 = vmatprep.subr.mxu0 %v956
        %1262 = vmatpush1.msra.mxu0 %v955
        %1263 = vmatprep.subr.mxu0 %v960
        %1264 = vmatpush1.msra.mxu0 %v959
        %1265 = vmatprep.subr.mxu0 %v964
        %1266 = vmatpush1.msra.mxu0 %v963
        %1267 = vmatprep.subr.mxu0 %v968
        %1268 = vmatpush1.msra.mxu0 %v967
        %1269 = vmatprep.subr.mxu0 %v972
        %1270 = vmatpush1.msra.mxu0 %v971
        %1271 = vmatprep.subr.mxu0 0.0
        %1272 = vmatpush1.msra.mxu0 0.0
        %1273 = vmatprep.subr.mxu0 0.0
        %1274 = vmatpush1.msra.mxu0 0.0
        %1275 = vmatprep.subr.mxu0 0.0
        %1276 = vmatpush1.msra.mxu0 0.0
        %1277 = vmatprep.subr.mxu0 0.0
        %1278 = vmatpush1.msra.mxu0 0.0
        %1279 = vmatprep.subr.mxu0 0.0
        %1280 = vmatpush1.msra.mxu0 0.0
        %1281 = vmatprep.subr.mxu0 0.0
        %1282 = vmatpush1.msra.mxu0 0.0
        %1283 = vmatprep.subr.mxu0 0.0
        %1284 = vmatpush1.msra.mxu0 0.0
        %1285 = vmatprep.subr.mxu0 0.0
        %1286 = vmatpush1.msra.mxu0 0.0
        %1287 = vmatprep.subr.mxu0 0.0
        %1288 = vmatpush1.msra.mxu0 0.0
        %1289 = vmatprep.subr.mxu0 0.0
        %1290 = vmatpush1.msra.mxu0 0.0
        %1291 = vmatprep.subr.mxu0 0.0
        %1292 = vmatpush1.msra.mxu0 0.0
        %1293 = vmatprep.subr.mxu0 0.0
        %1294 = vmatpush1.msra.mxu0 0.0
        %1295 = vmatprep.mubr.f32.mxu0 %v1226
        %1296 = vmatmul.mubr.f32.gmra.mrb[0].mxu0 %v1209
        %v1297 = vpop.f32.mrb[0].mxu0
        %v1298 = vadd.f32 %v1218, %v1297
        %v1299 = vpop.f32.mrb[0].mxu0
        %v1300 = vadd.f32 %v1218, %v1299
        %1301 = vmatprep.mubr.f32.mxu0 %v1229
        %1302 = vmatmul.mubr.f32.gmra.mrb[0].mxu0 %v1211
        %v1303 = vpop.f32.mrb[0].mxu0
        %v1304 = vadd.f32 %v1223, %v1303
        %v1305 = vpop.f32.mrb[0].mxu0
        %v1306 = vadd.f32 %v1223, %v1305
        %1307 = vdwg.mxu0
        %1308 = vmatprep.subr.mxu0 %v898
        %1309 = vmatpush1.msra.mxu0 %v897
        %1310 = vmatprep.subr.mxu0 %v902
        %1311 = vmatpush1.msra.mxu0 %v901
        %1312 = vmatprep.subr.mxu0 %v906
        %1313 = vmatpush1.msra.mxu0 %v905
        %1314 = vmatprep.subr.mxu0 %v910
        %1315 = vmatpush1.msra.mxu0 %v909
        %1316 = vmatprep.subr.mxu0 %v914
        %1317 = vmatpush1.msra.mxu0 %v913
        %1318 = vmatprep.subr.mxu0 %v918
        %1319 = vmatpush1.msra.mxu0 %v917
        %1320 = vmatprep.subr.mxu0 %v922
        %1321 = vmatpush1.msra.mxu0 %v921
        %1322 = vmatprep.subr.mxu0 %v926
        %1323 = vmatpush1.msra.mxu0 %v925
        %1324 = vmatprep.subr.mxu0 %v1196
        %1325 = vmatpush1.msra.mxu0 %v1195
        %1326 = vmatprep.subr.mxu0 %v1200
        %1327 = vmatpush1.msra.mxu0 %v1199
        %1328 = vmatprep.subr.mxu0 %v1204
        %1329 = vmatpush1.msra.mxu0 %v1203
        %1330 = vmatprep.subr.mxu0 %v1208
        %1331 = vmatpush1.msra.mxu0 %v1207
        %1332 = vmatprep.subr.mxu0 %v946
        %1333 = vmatpush1.msra.mxu0 %v945
        %1334 = vmatprep.subr.mxu0 %v950
        %1335 = vmatpush1.msra.mxu0 %v949
        %1336 = vmatprep.subr.mxu0 %v954
        %1337 = vmatpush1.msra.mxu0 %v953
        %1338 = vmatprep.subr.mxu0 %v958
        %1339 = vmatpush1.msra.mxu0 %v957
        %1340 = vmatprep.subr.mxu0 %v962
        %1341 = vmatpush1.msra.mxu0 %v961
        %1342 = vmatprep.subr.mxu0 %v966
        %1343 = vmatpush1.msra.mxu0 %v965
        %1344 = vmatprep.subr.mxu0 %v970
        %1345 = vmatpush1.msra.mxu0 %v969
        %1346 = vmatprep.subr.mxu0 %v974
        %1347 = vmatpush1.msra.mxu0 %v973
        %1348 = vmatprep.subr.mxu0 0.0
        %1349 = vmatpush1.msra.mxu0 0.0
        %1350 = vmatprep.subr.mxu0 0.0
        %1351 = vmatpush1.msra.mxu0 0.0
        %1352 = vmatprep.subr.mxu0 0.0
        %1353 = vmatpush1.msra.mxu0 0.0
        %1354 = vmatprep.subr.mxu0 0.0
        %1355 = vmatpush1.msra.mxu0 0.0
        %1356 = vmatprep.subr.mxu0 0.0
        %1357 = vmatpush1.msra.mxu0 0.0
        %1358 = vmatprep.subr.mxu0 0.0
        %1359 = vmatpush1.msra.mxu0 0.0
        %1360 = vmatprep.subr.mxu0 0.0
        %1361 = vmatpush1.msra.mxu0 0.0
        %1362 = vmatprep.subr.mxu0 0.0
        %1363 = vmatpush1.msra.mxu0 0.0
        %1364 = vmatprep.subr.mxu0 0.0
        %1365 = vmatpush1.msra.mxu0 0.0
        %1366 = vmatprep.subr.mxu0 0.0
        %1367 = vmatpush1.msra.mxu0 0.0
        %1368 = vmatprep.subr.mxu0 0.0
        %1369 = vmatpush1.msra.mxu0 0.0
        %1370 = vmatprep.subr.mxu0 0.0
        %1371 = vmatpush1.msra.mxu0 0.0
        %1372 = vmatprep.mubr.f32.mxu0 %v1226
        %1373 = vmatmul.mubr.f32.gmra.mrb[0].mxu0 %v1209
        %v1374 = vpop.f32.mrb[0].mxu0
        %v1375 = vadd.f32 %v1218, %v1374
        %v1376 = vpop.f32.mrb[0].mxu0
        %v1377 = vadd.f32 %v1218, %v1376
        %1378 = vmatprep.mubr.f32.mxu0 %v1229
        %1379 = vmatmul.mubr.f32.gmra.mrb[0].mxu0 %v1211
        %v1380 = vpop.f32.mrb[0].mxu0
        %v1381 = vadd.f32 %v1223, %v1380
        %v1382 = vpop.f32.mrb[0].mxu0
        %v1383 = vadd.f32 %v1223, %v1382
        %1384 = vdwg.mxu0
        %1385 = vst [vmem:[%s296] sm:$0xff] %v1298
        %1386 = vst [vmem:[%s296 + $0x8] sm:$0xff] %v1300
        %1387 = vst [vmem:[%s296 + $0x10] sm:$0xff] %v1375
        %1388 = vst [vmem:[%s296 + $0x18] sm:$0xff] %v1377
        %1389 = vst [vmem:[%s296 + $0x20] sm:$0xff] %v1304
        %1390 = vst [vmem:[%s296 + $0x28] sm:$0xff] %v1306
        %1391 = vst [vmem:[%s296 + $0x30] sm:$0xff] %v1381
        %1392 = vst [vmem:[%s296 + $0x38] sm:$0xff] %v1383
        %s1393 = sand.u32 %s197, 1
        %s1394 = scalar_lea.sflag [#allocation3], %s1393
        %s1395 = sand.u32 %s197, 1
        %s1396 = smul.addr %s1395, 64
        %s1397 = scalar_lea.vmem [#allocation2], %s1396
        // Predicated region
        $region49: #{tpu_custom_call.1} parent=47 // pred_check
          %p1398 = pneg %p207
        $region50: #{tpu_custom_call.1} parent=47 // pred_check_branch
          %1400 = sbr.rel (%p1398) target = $region52
        $region51: #{tpu_custom_call.1} parent=47 // pred_region
          %s1401 = smul.u32 4, %s26
          %s1403 = ssub.s32 1024, 1024
          %1404 = vsyncadd %s1394, %s1403
          %s1405 = smul.addr %s25, 8
          %s1406 = sadd.s32 %s1401, %s1405
          %s1407 = smul.addr %s1406, 128
          %s1408 = scalar_lea.hbm %s7, %s1407
          %s1409 = sshll.u32 %s1397, 4
          %s1410 = int_to_ptr.vmem [resolvable:$true] %s1409
          %1415 = dma.vmem_to_hbm [thread:$0]  %s1410, 1024, %s1408, %s1394, 512, 512, 32
        $region52: #{tpu_custom_call.1} parent=47 // pred_fallthru
          _
      $region48: #{tpu_custom_call.1} parent=5 // pred_fallthru
        _
      %p1416 = scmp.le.s32.totalorder 2, %s16
      // Predicated region
      $region53: #{tpu_custom_call.1} parent=5 // pred_check
        %p1417 = pneg %p1416
      $region54: #{tpu_custom_call.1} parent=5 // pred_check_branch
        %1419 = sbr.rel (%p1417) target = $region56
      $region55: #{tpu_custom_call.1} parent=5 // pred_region
        %s1420 = ssub.s32 %s16, 2
        // Predicated region
        $region57: #{tpu_custom_call.1} parent=55 // pred_check
          %p1421 = pneg %p213
        $region58: #{tpu_custom_call.1} parent=55 // pred_check_branch
          %1423 = sbr.rel (%p1421) target = $region60
        $region59: #{tpu_custom_call.1} parent=55 // pred_region
          %s1424 = sand.u32 %s198, 1
          %s1425 = scalar_lea.sflag [#allocation3], %s1424
          %s1426 = sand.u32 %s198, 1
          %s1427 = smul.addr %s1426, 64
          %s1428 = scalar_lea.vmem [#allocation2], %s1427
          %1429 = dma.done %s1425, 1024
        $region60: #{tpu_custom_call.1} parent=55 // pred_fallthru
          _
      $region56: #{tpu_custom_call.1} parent=5 // pred_fallthru
        _
    $region6: #{tpu_custom_call.1} parent=1 // loop_footer
      %s20 = sadd.s32 1, %s16
    $region7: #{tpu_custom_call.1} parent=1 // loop_footer_branch
      %15 = sbr.rel target = $region3
    $region8: #{tpu_custom_call.1} parent=1 // loop_exit
      _
    %1430 = vsyncpa [#allocation3], 1
    %s1431 = scalar_lea.sflag [#allocation3], 1
    %1432 = vsyncpa %s1431, 1

</llo_original>
